<compile_context>
chip_gen: v7x
topology: tpu7x:2x2x1
jax: 0.10.0
libtpu: 0.0.40
codegen_flags: <defaults>
</compile_context>

<pallas_src>
import functools

import jax
import jax.numpy as jnp
from jax.experimental import pallas as pl
from jax.experimental.pallas import tpu as pltpu


# ----------------------------------------------------------------------------
# Tiling / budget helpers.
# ----------------------------------------------------------------------------
def _vmem_budget():
    """Per-generation scoped-VMEM budget: ~half of physical, capped at 64 MiB.

    v5e/v6e (128 MiB physical) -> 64 MiB; v7x (64 MiB physical) -> 32 MiB.
    """
    cap = 128 * 1024 * 1024
    try:
        info = pltpu.get_tpu_info()
        cap = getattr(info, "vmem_capacity_bytes", cap) or cap
    except Exception:  # no TPU info available at trace time -> conservative
        pass
    return min(cap // 2, 64 * 1024 * 1024)


def _largest_divisor_leq(n, cap):
    t = max(1, min(n, cap))
    while n % t:
        t -= 1
    return t


def _sublane_tile(n, cap=512):
    """Largest tile <= cap dividing n that is a multiple of 8, else n."""
    if n <= cap:
        return n
    for t in range((cap // 8) * 8, 0, -8):
        if n % t == 0:
            return t
    return n


def _lane_tile(n, cap=512):
    """n is a multiple of 128; largest multiple-of-128 divisor of n <= cap."""
    t = max(128, (min(n, cap) // 128) * 128)
    while n % t:
        t -= 128
    return t


def _pick_time_chunk(S, B, Din, H, requested, vmem_budget):
    """Largest divisor of S <= requested whose per-chunk footprint fits VMEM."""
    def vmem_bytes(ts):
        x_blk = 2 * ts * B * Din                       # double-buffered x chunk
        out_blk = 2 * ts * B * H                       # double-buffered out chunk
        gx = ts * B * 4 * H                            # gate pre-act scratch
        w = 2 * (Din * 4 * H + H * 4 * H + 4 * H)      # 2-deep weight buffers
        carry = 2 * B * H                              # h/c carry
        return 4 * (x_blk + out_blk + gx + w + carry)

    ts = _largest_divisor_leq(S, max(1, min(requested, S)))
    while ts > 1 and vmem_bytes(ts) > vmem_budget:
        ts = _largest_divisor_leq(S, ts - 1)
    return ts


# ----------------------------------------------------------------------------
# Fused bidirectional LSTM layer.
#   grid = (2 directions ["parallel"], S // Ts time chunks ["arbitrary"])
# ----------------------------------------------------------------------------
def _bilstm_kernel(x_ref, wih_ref, whh_ref, b_ref, out_ref, gx_ref, h_ref, c_ref):
    # x_ref:   (Ts, B, Din) time-major input chunk
    # wih_ref: (Din, 4H)    this direction's W_ih^T
    # whh_ref: (H, 4H)      this direction's W_hh^T
    # b_ref:   (1, 4H)      b_ih + b_hh
    # out_ref: (Ts, B, H)   this direction's hidden-state chunk
    # gx_ref:  (Ts, B, 4H)  VMEM scratch, hoisted gate pre-activations
    # h_ref/c_ref: (B, H)   VMEM scratch, carried across time chunks
    d = pl.program_id(0)      # 0 = forward, 1 = backward
    tc = pl.program_id(1)     # time-chunk counter (per direction)
    Ts, B, Din = x_ref.shape
    H = h_ref.shape[1]

    @pl.when(tc == 0)
    def _():
        h_ref[...] = jnp.zeros_like(h_ref)
        c_ref[...] = jnp.zeros_like(c_ref)

    # Hoisted input projection: ONE (Ts*B, Din) x (Din, 4H) MXU matmul per
    # chunk (bias folded in), instead of a skinny matmul per timestep.
    gx = (jnp.dot(x_ref[...].reshape(Ts * B, Din), wih_ref[...],
                  preferred_element_type=jnp.float32)
          + b_ref[...])
    gx_ref[...] = gx.reshape(Ts, B, 4 * H)

    whh = whh_ref[...]

    def step(t, carry):
        h, c = carry
        # Forward walks the chunk 0..Ts-1; backward walks Ts-1..0.
        lt = (1 - d) * t + d * (Ts - 1 - t)
        gates = gx_ref[lt] + jnp.dot(h, whh, preferred_element_type=jnp.float32)
        i_g = jax.nn.sigmoid(gates[:, 0 * H:1 * H])
        f_g = jax.nn.sigmoid(gates[:, 1 * H:2 * H])
        g_g = jnp.tanh(gates[:, 2 * H:3 * H])
        o_g = jax.nn.sigmoid(gates[:, 3 * H:4 * H])
        c_new = f_g * c + i_g * g_g
        h_new = o_g * jnp.tanh(c_new)
        out_ref[lt] = h_new.astype(out_ref.dtype)
        return (h_new, c_new)

    h, c = jax.lax.fori_loop(0, Ts, step, (h_ref[...], c_ref[...]),
                             unroll=min(8, Ts))
    h_ref[...] = h
    c_ref[...] = c


def _bilstm(x_tm, layer_params, time_chunk, vmem_budget):
    """x_tm: (S, B, Din) time-major -> (S, B, 2H), [forward, backward] concat."""
    S, B, Din = x_tm.shape
    wih = layer_params["wih"]     # (2, Din, 4H)  pre-stacked at init
    whh = layer_params["whh"]     # (2, H, 4H)
    bias = layer_params["b"]      # (2, 1, 4H)
    H = whh.shape[1]
    Ts = _pick_time_chunk(S, B, Din, H, time_chunk, vmem_budget)
    nT = S // Ts

    def chunk_idx(d, t):
        # Physical time-chunk: ascending for forward, descending for backward.
        return (1 - d) * t + d * (nT - 1 - t)

    # Concat-free output: each direction writes its lane slice of (S, B, 2H)
    # directly.  Requires H % 128 == 0 (lane-aligned block offset d*H);
    # smaller/unaligned H falls back to the split layout + one concat.
    fused_out = (H % 128 == 0)
    if fused_out:
        out_shape = jax.ShapeDtypeStruct((S, B, 2 * H), jnp.float32)
        out_spec = pl.BlockSpec((Ts, B, H),
                                lambda d, t: (chunk_idx(d, t), 0, d))
    else:
        out_shape = jax.ShapeDtypeStruct((2, S, B, H), jnp.float32)
        out_spec = pl.BlockSpec((None, Ts, B, H),
                                lambda d, t: (d, chunk_idx(d, t), 0, 0))

    out = pl.pallas_call(
        _bilstm_kernel,
        out_shape=out_shape,
        grid=(2, nT),
        in_specs=[
            pl.BlockSpec((Ts, B, Din), lambda d, t: (chunk_idx(d, t), 0, 0)),
            pl.BlockSpec((None, Din, 4 * H), lambda d, t: (d, 0, 0)),
            pl.BlockSpec((None, H, 4 * H), lambda d, t: (d, 0, 0)),
            pl.BlockSpec((None, 1, 4 * H), lambda d, t: (d, 0, 0)),
        ],
        out_specs=out_spec,
        scratch_shapes=[
            pltpu.VMEM((Ts, B, 4 * H), jnp.float32),   # hoisted gate pre-acts
            pltpu.VMEM((B, H), jnp.float32),           # h carry
            pltpu.VMEM((B, H), jnp.float32),           # c carry
        ],
        compiler_params=pltpu.CompilerParams(
            dimension_semantics=("parallel", "arbitrary"),
            vmem_limit_bytes=vmem_budget),
    )(x_tm, wih, whh, bias)

    if fused_out:
        return out
    # (2, S, B, H) -> (S, B, 2H), [forward, backward] like PyTorch.
    return jnp.concatenate([out[0], out[1]], axis=-1)


# ----------------------------------------------------------------------------
# Fused head: tiled fc matmul + scalar-weighted layer mixing.
#   grid = (row tiles ["parallel"], vocab tiles ["arbitrary"])
#   The mixing output block is resident across the vocab axis and written once
#   at j == 0; emb/l1 blocks are keyed only on the row tile so Pallas fetches
#   them once per row tile (DMA skipped while the block index is unchanged).
# ----------------------------------------------------------------------------
def _head_kernel(scal_ref, l2_ref, emb_ref, l1_ref, w_ref, b_ref,
                 out_ref, final_ref):
    j = pl.program_id(1)

    @pl.when(j == 0)
    def _():
        s1 = scal_ref[0]
        s2 = scal_ref[1]
        s3 = scal_ref[2]
        gamma = scal_ref[3]
        final_ref[...] = gamma * (s1 * emb_ref[...] + s2 * l1_ref[...]
                                  + s3 * l2_ref[...])

    out_ref[...] = (jnp.dot(l2_ref[...], w_ref[...],
                            preferred_element_type=jnp.float32)
                    + b_ref[...])


def _head(scalars, l2_2d, emb_2d, l1_2d, w_t, b, vmem_budget):
    N, D = l2_2d.shape
    Vp = w_t.shape[1]            # already padded to a multiple of 128 at init
    tn = _sublane_tile(N)        # N is a multiple of 8 (batch padded)
    tv = _lane_tile(Vp)

    def row_blk():
        return pl.BlockSpec((tn, D), lambda i, j: (i, 0))

    out, final = pl.pallas_call(
        _head_kernel,
        out_shape=(jax.ShapeDtypeStruct((N, Vp), jnp.float32),
                   jax.ShapeDtypeStruct((N, D), jnp.float32)),
        grid=(N // tn, Vp // tv),
        in_specs=[
            pl.BlockSpec(memory_space=pltpu.MemorySpace.SMEM),   # s1,s2,s3,gamma
            row_blk(),                                           # lstm2 rows
            row_blk(),                                           # embedded rows
            row_blk(),                                           # lstm1 rows
            pl.BlockSpec((D, tv), lambda i, j: (0, j)),          # fc weight
            pl.BlockSpec((1, tv), lambda i, j: (0, j)),          # fc bias
        ],
        out_specs=(pl.BlockSpec((tn, tv), lambda i, j: (i, j)),  # logits
                   pl.BlockSpec((tn, D), lambda i, j: (i, 0))),  # mixed final
        compiler_params=pltpu.CompilerParams(
            dimension_semantics=("parallel", "arbitrary"),
            vmem_limit_bytes=vmem_budget),
    )(scalars, l2_2d, emb_2d, l1_2d, w_t, b)
    return final, out


# ----------------------------------------------------------------------------
# ELMo forward (glue in plain JAX, compute in Pallas kernels).
# ----------------------------------------------------------------------------
def elmo_forward(params, input_ids, *, vocab_size, time_chunk=64):
    B, S = input_ids.shape
    # Pad batch to a sublane multiple: every per-timestep (B, H) store and
    # head row tile becomes sublane-dense (no masked vst.msk).
    Bp = ((B + 7) // 8) * 8
    ids = input_ids if Bp == B else jnp.pad(input_ids, ((0, Bp - B), (0, 0)))
    vmem_budget = _vmem_budget()

    # Embedding gather straight into time-major layout (S, Bp, E) for the LSTMs.
    emb_tm = jnp.take(params["embedding"], ids.T, axis=0)
    l1_tm = _bilstm(emb_tm, params["lstm1"], time_chunk, vmem_budget)
    # dropout: identity (eval mode)
    l2_tm = _bilstm(l1_tm, params["lstm2"], time_chunk, vmem_budget)

    D = l2_tm.shape[-1]
    if emb_tm.shape[-1] != D:
        raise ValueError("ELMo mixing requires embedding_dim == 2 * hidden_dim")

    # Head runs batch-major so `final` and the (much larger) logits come out
    # directly in (B, S, *) layout: no output transpose of the logits.
    emb_bm = jnp.take(params["embedding"], ids, axis=0)       # (Bp, S, E)
    l1_bm = l1_tm.transpose(1, 0, 2)                          # (Bp, S, 2H)
    l2_bm = l2_tm.transpose(1, 0, 2)                          # (Bp, S, 2H)
    N = Bp * S
    final2d, out2d = _head(params["scalars"],
                           l2_bm.reshape(N, D),
                           emb_bm.reshape(N, D),
                           l1_bm.reshape(N, D),
                           params["fc_w_t"], params["fc_b"], vmem_budget)

    Vp = params["fc_w_t"].shape[1]
    final = final2d.reshape(Bp, S, D)                         # (Bp, S, 2H)
    out = out2d.reshape(Bp, S, Vp)                            # (Bp, S, Vp)
    if Bp != B:
        final = final[:B]
        out = out[:B]
    if Vp != vocab_size:
        out = out[:, :, :vocab_size]
    return final, out


# ----------------------------------------------------------------------------
# Deterministic parameter init (shapes match nn.LSTM / nn.Linear / nn.Embedding).
# All per-call weight plumbing (direction stacking, vocab padding) is done here
# once, outside the hot forward path.
# ----------------------------------------------------------------------------
def init_params(key, vocab_size, embedding_dim, hidden_dim):
    keys = jax.random.split(key, 8)
    H = hidden_dim

    def u(k, shape, scale=0.1):
        return jax.random.uniform(k, shape, jnp.float32, -scale, scale)

    def lstm_dir(k, din):
        k1, k2, k3, k4 = jax.random.split(k, 4)
        w_ih = u(k1, (4 * H, din))        # PyTorch weight_ih: (4H, Din)
        w_hh = u(k2, (4 * H, H))          # PyTorch weight_hh: (4H, H)
        b_ih = u(k3, (4 * H,))
        b_hh = u(k4, (4 * H,))
        return (w_ih.T, w_hh.T, (b_ih + b_hh).reshape(1, 4 * H))

    def lstm_layer(kf, kb, din):
        f = lstm_dir(kf, din)
        b = lstm_dir(kb, din)
        return {"wih": jnp.stack([f[0], b[0]]),    # (2, Din, 4H)
                "whh": jnp.stack([f[1], b[1]]),    # (2, H, 4H)
                "b": jnp.stack([f[2], b[2]])}      # (2, 1, 4H)

    V = vocab_size
    Vp = ((V + 127) // 128) * 128                  # lane-dense logits tiles
    fc_w_t = u(keys[5], (V, 2 * H)).T              # (2H, V)
    fc_b = u(keys[6], (V,)).reshape(1, -1)         # (1, V)
    if Vp != V:
        fc_w_t = jnp.pad(fc_w_t, ((0, 0), (0, Vp - V)))
        fc_b = jnp.pad(fc_b, ((0, 0), (0, Vp - V)))

    return {
        "embedding": u(keys[0], (V, embedding_dim), 1.0),
        "lstm1": lstm_layer(keys[1], keys[2], embedding_dim),
        "lstm2": lstm_layer(keys[3], keys[4], 2 * H),
        "fc_w_t": fc_w_t,                                      # (2H, Vp)
        "fc_b": fc_b,                                          # (1, Vp)
        "scalars": jax.random.uniform(keys[7], (4,), jnp.float32),  # s1,s2,s3,gamma
    }


# ----------------------------------------------------------------------------
# Pure-JAX reference (for sanity checking kernel output).
# ----------------------------------------------------------------------------
def _lstm_dir_ref(x_tm, wih_t, whh_t, b):
    H = whh_t.shape[0]
    B = x_tm.shape[1]

    def step(carry, x_t):
        h, c = carry
        gates = x_t @ wih_t + h @ whh_t + b
        i = jax.nn.sigmoid(gates[:, :H])
        f = jax.nn.sigmoid(gates[:, H:2 * H])
        g = jnp.tanh(gates[:, 2 * H:3 * H])
        o = jax.nn.sigmoid(gates[:, 3 * H:])
        c = f * c + i * g
        h = o * jnp.tanh(c)
        return (h, c), h

    init = (jnp.zeros((B, H), jnp.float32), jnp.zeros((B, H), jnp.float32))
    _, hs = jax.lax.scan(step, init, x_tm)
    return hs


def elmo_ref(params, ids, vocab_size):
    emb = jnp.take(params["embedding"], ids, axis=0)

    def bil(x, lp):
        x_tm = jnp.transpose(x, (1, 0, 2))
        hf = _lstm_dir_ref(x_tm, lp["wih"][0], lp["whh"][0], lp["b"][0])
        hb = _lstm_dir_ref(x_tm[::-1], lp["wih"][1], lp["whh"][1], lp["b"][1])[::-1]
        return jnp.transpose(jnp.concatenate([hf, hb], -1), (1, 0, 2))

    l1 = bil(emb, params["lstm1"])
    l2 = bil(l1, params["lstm2"])
    out = l2 @ params["fc_w_t"][:, :vocab_size] + params["fc_b"][0, :vocab_size]
    s1, s2, s3, gamma = params["scalars"]
    final = gamma * (s1 * emb + s2 * l1 + s3 * l2)
    return final, out


if __name__ == "__main__":
    # Small shapes: E must equal 2*H for the PyTorch broadcast in the forward.
    vocab_size, embedding_dim, hidden_dim = 50, 32, 16
    B, S = 2, 8

    key = jax.random.PRNGKey(0)
    kp, kx = jax.random.split(key)
    params = init_params(kp, vocab_size, embedding_dim, hidden_dim)
    input_ids = jax.random.randint(kx, (B, S), 0, vocab_size, dtype=jnp.int32)

    # time_chunk=4 exercises the chunked recurrence (h/c carried across grid
    # steps, reversed chunk order for the backward direction).
    elmo = jax.jit(functools.partial(elmo_forward, vocab_size=vocab_size,
                                     time_chunk=4))
    final, out = elmo(params, input_ids)
    jax.block_until_ready((final, out))

    assert final.shape == (B, S, 2 * hidden_dim)
    assert out.shape == (B, S, vocab_size)

    ref_final, ref_out = elmo_ref(params, input_ids, vocab_size)
    assert jnp.allclose(final, ref_final, atol=1e-4, rtol=1e-4)
    assert jnp.allclose(out, ref_out, atol=1e-4, rtol=1e-4)

    print("KERNEL_OK")
</pallas_src>

<mosaic_0001>
module attributes {stable_mosaic.version = 11 : i64} {
  func.func @_bilstm_kernel(%arg0: i32, %arg1: i32, %arg2: memref<4x8x32xf32, #tpu.memory_space<vmem>>, %arg3: memref<1x32x64xf32, #tpu.memory_space<vmem>>, %arg4: memref<1x16x64xf32, #tpu.memory_space<vmem>>, %arg5: memref<1x1x64xf32, #tpu.memory_space<vmem>>, %arg6: memref<1x4x8x16xf32, #tpu.memory_space<vmem>>, %arg7: memref<4x8x64xf32, #tpu.memory_space<vmem>>, %arg8: memref<8x16xf32, #tpu.memory_space<vmem>>, %arg9: memref<8x16xf32, #tpu.memory_space<vmem>>) attributes {dimension_semantics = [#tpu.dimension_semantics<parallel>, #tpu.dimension_semantics<arbitrary>], iteration_bounds = array<i64: 2, 2>, scalar_prefetch = 0 : i64, scratch_operands = 3 : i64, tpu.core_type = #tpu.core_type<tc>, window_params = [{transform_indices = @transform_0, window_bounds = array<i64: 4, 8, 32>}, {transform_indices = @transform_1, window_bounds = array<i64: 1, 32, 64>}, {transform_indices = @transform_2, window_bounds = array<i64: 1, 16, 64>}, {transform_indices = @transform_3, window_bounds = array<i64: 1, 1, 64>}, {transform_indices = @transform_4, window_bounds = array<i64: 1, 4, 8, 16>}]} {
    %c0_i32 = arith.constant 0 : i32
    %0 = arith.cmpi eq, %arg1, %c0_i32 : i32
    %1 = arith.extui %0 : i1 to i32
    %c0_i32_0 = arith.constant 0 : i32
    %2 = arith.cmpi ne, %1, %c0_i32_0 : i32
    scf.if %2 {
      %cst_68 = arith.constant 0.000000e+00 : f32
      %176 = vector.broadcast %cst_68 : f32 to vector<8x16xf32>
      %c0_69 = arith.constant 0 : index
      %c0_70 = arith.constant 0 : index
      %177 = vector.load %arg8[%c0_69, %c0_70] : memref<8x16xf32, #tpu.memory_space<vmem>>, vector<8x16xf32>
      tpu.vector_store %arg8[%c0_69, %c0_70], %176 {strides = array<i32>} : memref<8x16xf32, #tpu.memory_space<vmem>>, vector<8x16xf32>,
      %cst_71 = arith.constant 0.000000e+00 : f32
      %178 = vector.broadcast %cst_71 : f32 to vector<8x16xf32>
      %c0_72 = arith.constant 0 : index
      %c0_73 = arith.constant 0 : index
      %179 = vector.load %arg9[%c0_72, %c0_73] : memref<8x16xf32, #tpu.memory_space<vmem>>, vector<8x16xf32>
      tpu.vector_store %arg9[%c0_72, %c0_73], %178 {strides = array<i32>} : memref<8x16xf32, #tpu.memory_space<vmem>>, vector<8x16xf32>,
    } else {
    }
    %c0 = arith.constant 0 : index
    %c0_1 = arith.constant 0 : index
    %c0_2 = arith.constant 0 : index
    %3 = vector.load %arg2[%c0, %c0_1, %c0_2] : memref<4x8x32xf32, #tpu.memory_space<vmem>>, vector<4x8x32xf32>
    %4 = vector.shape_cast %3 : vector<4x8x32xf32> to vector<32x32xf32>
    %c0_3 = arith.constant 0 : index
    %c0_4 = arith.constant 0 : index
    %c0_5 = arith.constant 0 : index
    %5 = vector.load %arg3[%c0_3, %c0_4, %c0_5] : memref<1x32x64xf32, #tpu.memory_space<vmem>>, vector<1x32x64xf32>
    %6 = vector.shape_cast %5 : vector<1x32x64xf32> to vector<32x64xf32>
    %cst = arith.constant dense<0.000000e+00> : vector<32x64xf32>
    %7 = tpu.matmul %4, %6, %cst {dimension_numbers = #tpu.dot_dimension_numbers<[1], [0], [0], [1], [0, 0, 1, 1], [], []>} : vector<32x32xf32>, vector<32x64xf32>, vector<32x64xf32> -> vector<32x64xf32>
    %c0_6 = arith.constant 0 : index
    %c0_7 = arith.constant 0 : index
    %c0_8 = arith.constant 0 : index
    %8 = vector.load %arg5[%c0_6, %c0_7, %c0_8] : memref<1x1x64xf32, #tpu.memory_space<vmem>>, vector<1x1x64xf32>
    %9 = vector.shape_cast %8 : vector<1x1x64xf32> to vector<1x64xf32>
    %10 = vector.broadcast %9 : vector<1x64xf32> to vector<32x64xf32>
    %11 = arith.addf %7, %10 : vector<32x64xf32>
    %12 = vector.shape_cast %11 : vector<32x64xf32> to vector<4x8x64xf32>
    %c0_9 = arith.constant 0 : index
    %c0_10 = arith.constant 0 : index
    %c0_11 = arith.constant 0 : index
    %13 = vector.load %arg7[%c0_9, %c0_10, %c0_11] : memref<4x8x64xf32, #tpu.memory_space<vmem>>, vector<4x8x64xf32>
    tpu.vector_store %arg7[%c0_9, %c0_10, %c0_11], %12 {strides = array<i32>} : memref<4x8x64xf32, #tpu.memory_space<vmem>>, vector<4x8x64xf32>,
    %c0_12 = arith.constant 0 : index
    %c0_13 = arith.constant 0 : index
    %c0_14 = arith.constant 0 : index
    %14 = vector.load %arg4[%c0_12, %c0_13, %c0_14] : memref<1x16x64xf32, #tpu.memory_space<vmem>>, vector<1x16x64xf32>
    %15 = vector.shape_cast %14 : vector<1x16x64xf32> to vector<16x64xf32>
    %c0_15 = arith.constant 0 : index
    %c0_16 = arith.constant 0 : index
    %16 = vector.load %arg8[%c0_15, %c0_16] : memref<8x16xf32, #tpu.memory_space<vmem>>, vector<8x16xf32>
    %c0_17 = arith.constant 0 : index
    %c0_18 = arith.constant 0 : index
    %17 = vector.load %arg9[%c0_17, %c0_18] : memref<8x16xf32, #tpu.memory_space<vmem>>, vector<8x16xf32>
    %c0_i32_19 = arith.constant 0 : i32
    %c1_i32 = arith.constant 1 : i32
    %18 = arith.subi %c1_i32, %arg0 : i32
    %19 = arith.muli %18, %c0_i32_19 : i32
    %c3_i32 = arith.constant 3 : i32
    %20 = arith.subi %c3_i32, %c0_i32_19 : i32
    %21 = arith.muli %arg0, %20 : i32
    %22 = arith.addi %19, %21 : i32
    %23 = arith.index_cast %22 : i32 to index
    %c0_20 = arith.constant 0 : index
    %c0_21 = arith.constant 0 : index
    %24 = vector.load %arg7[%23, %c0_20, %c0_21] : memref<4x8x64xf32, #tpu.memory_space<vmem>>, vector<1x8x64xf32>
    %25 = vector.shape_cast %24 : vector<1x8x64xf32> to vector<8x64xf32>
    %cst_22 = arith.constant dense<0.000000e+00> : vector<8x64xf32>
    %26 = tpu.matmul %16, %15, %cst_22 {dimension_numbers = #tpu.dot_dimension_numbers<[1], [0], [0], [1], [0, 0, 1, 1], [], []>} : vector<8x16xf32>, vector<16x64xf32>, vector<8x64xf32> -> vector<8x64xf32>
    %27 = arith.addf %25, %26 : vector<8x64xf32>
    %28 = vector.extract_strided_slice %27 {offsets = [0, 0], sizes = [8, 16], strides = [1, 1]} : vector<8x64xf32> to vector<8x16xf32>
    %29 = arith.negf %28 : vector<8x16xf32>
    %30 = math.exp %29 : vector<8x16xf32>
    %cst_23 = arith.constant 1.000000e+00 : f32
    %31 = vector.broadcast %cst_23 : f32 to vector<8x16xf32>
    %32 = arith.addf %31, %30 : vector<8x16xf32>
    %33 = arith.divf %31, %32 : vector<8x16xf32>
    %34 = vector.extract_strided_slice %27 {offsets = [0, 16], sizes = [8, 16], strides = [1, 1]} : vector<8x64xf32> to vector<8x16xf32>
    %35 = arith.negf %34 : vector<8x16xf32>
    %36 = math.exp %35 : vector<8x16xf32>
    %cst_24 = arith.constant 1.000000e+00 : f32
    %37 = vector.broadcast %cst_24 : f32 to vector<8x16xf32>
    %38 = arith.addf %37, %36 : vector<8x16xf32>
    %39 = arith.divf %37, %38 : vector<8x16xf32>
    %40 = vector.extract_strided_slice %27 {offsets = [0, 32], sizes = [8, 16], strides = [1, 1]} : vector<8x64xf32> to vector<8x16xf32>
    %41 = math.tanh %40 : vector<8x16xf32>
    %42 = vector.extract_strided_slice %27 {offsets = [0, 48], sizes = [8, 16], strides = [1, 1]} : vector<8x64xf32> to vector<8x16xf32>
    %43 = arith.negf %42 : vector<8x16xf32>
    %44 = math.exp %43 : vector<8x16xf32>
    %cst_25 = arith.constant 1.000000e+00 : f32
    %45 = vector.broadcast %cst_25 : f32 to vector<8x16xf32>
    %46 = arith.addf %45, %44 : vector<8x16xf32>
    %47 = arith.divf %45, %46 : vector<8x16xf32>
    %48 = arith.mulf %39, %17 : vector<8x16xf32>
    %49 = arith.mulf %33, %41 : vector<8x16xf32>
    %50 = arith.addf %48, %49 : vector<8x16xf32>
    %51 = math.tanh %50 : vector<8x16xf32>
    %52 = arith.mulf %47, %51 : vector<8x16xf32>
    %c0_26 = arith.constant 0 : index
    %53 = arith.index_cast %22 : i32 to index
    %c0_27 = arith.constant 0 : index
    %c0_28 = arith.constant 0 : index
    %54 = vector.load %arg6[%c0_26, %53, %c0_27, %c0_28] : memref<1x4x8x16xf32, #tpu.memory_space<vmem>>, vector<1x1x8x16xf32>
    %55 = vector.shape_cast %54 : vector<1x1x8x16xf32> to vector<8x16xf32>
    %56 = vector.shape_cast %52 : vector<8x16xf32> to vector<1x1x8x16xf32>
    tpu.vector_store %arg6[%c0_26, %53, %c0_27, %c0_28], %56 {strides = array<i32>} : memref<1x4x8x16xf32, #tpu.memory_space<vmem>>, vector<1x1x8x16xf32>,
    %c1_i32_29 = arith.constant 1 : i32
    %c1_i32_30 = arith.constant 1 : i32
    %57 = arith.subi %c1_i32_30, %arg0 : i32
    %58 = arith.muli %57, %c1_i32_29 : i32
    %c3_i32_31 = arith.constant 3 : i32
    %59 = arith.subi %c3_i32_31, %c1_i32_29 : i32
    %60 = arith.muli %arg0, %59 : i32
    %61 = arith.addi %58, %60 : i32
    %62 = arith.index_cast %61 : i32 to index
    %c0_32 = arith.constant 0 : index
    %c0_33 = arith.constant 0 : index
    %63 = vector.load %arg7[%62, %c0_32, %c0_33] : memref<4x8x64xf32, #tpu.memory_space<vmem>>, vector<1x8x64xf32>
    %64 = vector.shape_cast %63 : vector<1x8x64xf32> to vector<8x64xf32>
    %cst_34 = arith.constant dense<0.000000e+00> : vector<8x64xf32>
    %65 = tpu.matmul %52, %15, %cst_34 {dimension_numbers = #tpu.dot_dimension_numbers<[1], [0], [0], [1], [0, 0, 1, 1], [], []>} : vector<8x16xf32>, vector<16x64xf32>, vector<8x64xf32> -> vector<8x64xf32>
    %66 = arith.addf %64, %65 : vector<8x64xf32>
    %67 = vector.extract_strided_slice %66 {offsets = [0, 0], sizes = [8, 16], strides = [1, 1]} : vector<8x64xf32> to vector<8x16xf32>
    %68 = arith.negf %67 : vector<8x16xf32>
    %69 = math.exp %68 : vector<8x16xf32>
    %cst_35 = arith.constant 1.000000e+00 : f32
    %70 = vector.broadcast %cst_35 : f32 to vector<8x16xf32>
    %71 = arith.addf %70, %69 : vector<8x16xf32>
    %72 = arith.divf %70, %71 : vector<8x16xf32>
    %73 = vector.extract_strided_slice %66 {offsets = [0, 16], sizes = [8, 16], strides = [1, 1]} : vector<8x64xf32> to vector<8x16xf32>
    %74 = arith.negf %73 : vector<8x16xf32>
    %75 = math.exp %74 : vector<8x16xf32>
    %cst_36 = arith.constant 1.000000e+00 : f32
    %76 = vector.broadcast %cst_36 : f32 to vector<8x16xf32>
    %77 = arith.addf %76, %75 : vector<8x16xf32>
    %78 = arith.divf %76, %77 : vector<8x16xf32>
    %79 = vector.extract_strided_slice %66 {offsets = [0, 32], sizes = [8, 16], strides = [1, 1]} : vector<8x64xf32> to vector<8x16xf32>
    %80 = math.tanh %79 : vector<8x16xf32>
    %81 = vector.extract_strided_slice %66 {offsets = [0, 48], sizes = [8, 16], strides = [1, 1]} : vector<8x64xf32> to vector<8x16xf32>
    %82 = arith.negf %81 : vector<8x16xf32>
    %83 = math.exp %82 : vector<8x16xf32>
    %cst_37 = arith.constant 1.000000e+00 : f32
    %84 = vector.broadcast %cst_37 : f32 to vector<8x16xf32>
    %85 = arith.addf %84, %83 : vector<8x16xf32>
    %86 = arith.divf %84, %85 : vector<8x16xf32>
    %87 = arith.mulf %78, %50 : vector<8x16xf32>
    %88 = arith.mulf %72, %80 : vector<8x16xf32>
    %89 = arith.addf %87, %88 : vector<8x16xf32>
    %90 = math.tanh %89 : vector<8x16xf32>
    %91 = arith.mulf %86, %90 : vector<8x16xf32>
    %c0_38 = arith.constant 0 : index
    %92 = arith.index_cast %61 : i32 to index
    %c0_39 = arith.constant 0 : index
    %c0_40 = arith.constant 0 : index
    %93 = vector.load %arg6[%c0_38, %92, %c0_39, %c0_40] : memref<1x4x8x16xf32, #tpu.memory_space<vmem>>, vector<1x1x8x16xf32>
    %94 = vector.shape_cast %93 : vector<1x1x8x16xf32> to vector<8x16xf32>
    %95 = vector.shape_cast %91 : vector<8x16xf32> to vector<1x1x8x16xf32>
    tpu.vector_store %arg6[%c0_38, %92, %c0_39, %c0_40], %95 {strides = array<i32>} : memref<1x4x8x16xf32, #tpu.memory_space<vmem>>, vector<1x1x8x16xf32>,
    %c2_i32 = arith.constant 2 : i32
    %c1_i32_41 = arith.constant 1 : i32
    %96 = arith.subi %c1_i32_41, %arg0 : i32
    %97 = arith.muli %96, %c2_i32 : i32
    %c3_i32_42 = arith.constant 3 : i32
    %98 = arith.subi %c3_i32_42, %c2_i32 : i32
    %99 = arith.muli %arg0, %98 : i32
    %100 = arith.addi %97, %99 : i32
    %101 = arith.index_cast %100 : i32 to index
    %c0_43 = arith.constant 0 : index
    %c0_44 = arith.constant 0 : index
    %102 = vector.load %arg7[%101, %c0_43, %c0_44] : memref<4x8x64xf32, #tpu.memory_space<vmem>>, vector<1x8x64xf32>
    %103 = vector.shape_cast %102 : vector<1x8x64xf32> to vector<8x64xf32>
    %cst_45 = arith.constant dense<0.000000e+00> : vector<8x64xf32>
    %104 = tpu.matmul %91, %15, %cst_45 {dimension_numbers = #tpu.dot_dimension_numbers<[1], [0], [0], [1], [0, 0, 1, 1], [], []>} : vector<8x16xf32>, vector<16x64xf32>, vector<8x64xf32> -> vector<8x64xf32>
    %105 = arith.addf %103, %104 : vector<8x64xf32>
    %106 = vector.extract_strided_slice %105 {offsets = [0, 0], sizes = [8, 16], strides = [1, 1]} : vector<8x64xf32> to vector<8x16xf32>
    %107 = arith.negf %106 : vector<8x16xf32>
    %108 = math.exp %107 : vector<8x16xf32>
    %cst_46 = arith.constant 1.000000e+00 : f32
    %109 = vector.broadcast %cst_46 : f32 to vector<8x16xf32>
    %110 = arith.addf %109, %108 : vector<8x16xf32>
    %111 = arith.divf %109, %110 : vector<8x16xf32>
    %112 = vector.extract_strided_slice %105 {offsets = [0, 16], sizes = [8, 16], strides = [1, 1]} : vector<8x64xf32> to vector<8x16xf32>
    %113 = arith.negf %112 : vector<8x16xf32>
    %114 = math.exp %113 : vector<8x16xf32>
    %cst_47 = arith.constant 1.000000e+00 : f32
    %115 = vector.broadcast %cst_47 : f32 to vector<8x16xf32>
    %116 = arith.addf %115, %114 : vector<8x16xf32>
    %117 = arith.divf %115, %116 : vector<8x16xf32>
    %118 = vector.extract_strided_slice %105 {offsets = [0, 32], sizes = [8, 16], strides = [1, 1]} : vector<8x64xf32> to vector<8x16xf32>
    %119 = math.tanh %118 : vector<8x16xf32>
    %120 = vector.extract_strided_slice %105 {offsets = [0, 48], sizes = [8, 16], strides = [1, 1]} : vector<8x64xf32> to vector<8x16xf32>
    %121 = arith.negf %120 : vector<8x16xf32>
    %122 = math.exp %121 : vector<8x16xf32>
    %cst_48 = arith.constant 1.000000e+00 : f32
    %123 = vector.broadcast %cst_48 : f32 to vector<8x16xf32>
    %124 = arith.addf %123, %122 : vector<8x16xf32>
    %125 = arith.divf %123, %124 : vector<8x16xf32>
    %126 = arith.mulf %117, %89 : vector<8x16xf32>
    %127 = arith.mulf %111, %119 : vector<8x16xf32>
    %128 = arith.addf %126, %127 : vector<8x16xf32>
    %129 = math.tanh %128 : vector<8x16xf32>
    %130 = arith.mulf %125, %129 : vector<8x16xf32>
    %c0_49 = arith.constant 0 : index
    %131 = arith.index_cast %100 : i32 to index
    %c0_50 = arith.constant 0 : index
    %c0_51 = arith.constant 0 : index
    %132 = vector.load %arg6[%c0_49, %131, %c0_50, %c0_51] : memref<1x4x8x16xf32, #tpu.memory_space<vmem>>, vector<1x1x8x16xf32>
    %133 = vector.shape_cast %132 : vector<1x1x8x16xf32> to vector<8x16xf32>
    %134 = vector.shape_cast %130 : vector<8x16xf32> to vector<1x1x8x16xf32>
    tpu.vector_store %arg6[%c0_49, %131, %c0_50, %c0_51], %134 {strides = array<i32>} : memref<1x4x8x16xf32, #tpu.memory_space<vmem>>, vector<1x1x8x16xf32>,
    %c3_i32_52 = arith.constant 3 : i32
    %c1_i32_53 = arith.constant 1 : i32
    %135 = arith.subi %c1_i32_53, %arg0 : i32
    %136 = arith.muli %135, %c3_i32_52 : i32
    %c3_i32_54 = arith.constant 3 : i32
    %137 = arith.subi %c3_i32_54, %c3_i32_52 : i32
    %138 = arith.muli %arg0, %137 : i32
    %139 = arith.addi %136, %138 : i32
    %140 = arith.index_cast %139 : i32 to index
    %c0_55 = arith.constant 0 : index
    %c0_56 = arith.constant 0 : index
    %141 = vector.load %arg7[%140, %c0_55, %c0_56] : memref<4x8x64xf32, #tpu.memory_space<vmem>>, vector<1x8x64xf32>
    %142 = vector.shape_cast %141 : vector<1x8x64xf32> to vector<8x64xf32>
    %cst_57 = arith.constant dense<0.000000e+00> : vector<8x64xf32>
    %143 = tpu.matmul %130, %15, %cst_57 {dimension_numbers = #tpu.dot_dimension_numbers<[1], [0], [0], [1], [0, 0, 1, 1], [], []>} : vector<8x16xf32>, vector<16x64xf32>, vector<8x64xf32> -> vector<8x64xf32>
    %144 = arith.addf %142, %143 : vector<8x64xf32>
    %145 = vector.extract_strided_slice %144 {offsets = [0, 0], sizes = [8, 16], strides = [1, 1]} : vector<8x64xf32> to vector<8x16xf32>
    %146 = arith.negf %145 : vector<8x16xf32>
    %147 = math.exp %146 : vector<8x16xf32>
    %cst_58 = arith.constant 1.000000e+00 : f32
    %148 = vector.broadcast %cst_58 : f32 to vector<8x16xf32>
    %149 = arith.addf %148, %147 : vector<8x16xf32>
    %150 = arith.divf %148, %149 : vector<8x16xf32>
    %151 = vector.extract_strided_slice %144 {offsets = [0, 16], sizes = [8, 16], strides = [1, 1]} : vector<8x64xf32> to vector<8x16xf32>
    %152 = arith.negf %151 : vector<8x16xf32>
    %153 = math.exp %152 : vector<8x16xf32>
    %cst_59 = arith.constant 1.000000e+00 : f32
    %154 = vector.broadcast %cst_59 : f32 to vector<8x16xf32>
    %155 = arith.addf %154, %153 : vector<8x16xf32>
    %156 = arith.divf %154, %155 : vector<8x16xf32>
    %157 = vector.extract_strided_slice %144 {offsets = [0, 32], sizes = [8, 16], strides = [1, 1]} : vector<8x64xf32> to vector<8x16xf32>
    %158 = math.tanh %157 : vector<8x16xf32>
    %159 = vector.extract_strided_slice %144 {offsets = [0, 48], sizes = [8, 16], strides = [1, 1]} : vector<8x64xf32> to vector<8x16xf32>
    %160 = arith.negf %159 : vector<8x16xf32>
    %161 = math.exp %160 : vector<8x16xf32>
    %cst_60 = arith.constant 1.000000e+00 : f32
    %162 = vector.broadcast %cst_60 : f32 to vector<8x16xf32>
    %163 = arith.addf %162, %161 : vector<8x16xf32>
    %164 = arith.divf %162, %163 : vector<8x16xf32>
    %165 = arith.mulf %156, %128 : vector<8x16xf32>
    %166 = arith.mulf %150, %158 : vector<8x16xf32>
    %167 = arith.addf %165, %166 : vector<8x16xf32>
    %168 = math.tanh %167 : vector<8x16xf32>
    %169 = arith.mulf %164, %168 : vector<8x16xf32>
    %c0_61 = arith.constant 0 : index
    %170 = arith.index_cast %139 : i32 to index
    %c0_62 = arith.constant 0 : index
    %c0_63 = arith.constant 0 : index
    %171 = vector.load %arg6[%c0_61, %170, %c0_62, %c0_63] : memref<1x4x8x16xf32, #tpu.memory_space<vmem>>, vector<1x1x8x16xf32>
    %172 = vector.shape_cast %171 : vector<1x1x8x16xf32> to vector<8x16xf32>
    %173 = vector.shape_cast %169 : vector<8x16xf32> to vector<1x1x8x16xf32>
    tpu.vector_store %arg6[%c0_61, %170, %c0_62, %c0_63], %173 {strides = array<i32>} : memref<1x4x8x16xf32, #tpu.memory_space<vmem>>, vector<1x1x8x16xf32>,
    %c4_i32 = arith.constant 4 : i32
    %c0_64 = arith.constant 0 : index
    %c0_65 = arith.constant 0 : index
    %174 = vector.load %arg8[%c0_64, %c0_65] : memref<8x16xf32, #tpu.memory_space<vmem>>, vector<8x16xf32>
    tpu.vector_store %arg8[%c0_64, %c0_65], %169 {strides = array<i32>} : memref<8x16xf32, #tpu.memory_space<vmem>>, vector<8x16xf32>,
    %c0_66 = arith.constant 0 : index
    %c0_67 = arith.constant 0 : index
    %175 = vector.load %arg9[%c0_66, %c0_67] : memref<8x16xf32, #tpu.memory_space<vmem>>, vector<8x16xf32>
    tpu.vector_store %arg9[%c0_66, %c0_67], %167 {strides = array<i32>} : memref<8x16xf32, #tpu.memory_space<vmem>>, vector<8x16xf32>,
    return
  }
  func.func @transform_0(%arg0: i32, %arg1: i32) -> (i32, i32, i32) {
    %c1_i32 = arith.constant 1 : i32
    %0 = arith.subi %c1_i32, %arg0 : i32
    %1 = arith.muli %0, %arg1 : i32
    %c1_i32_0 = arith.constant 1 : i32
    %2 = arith.subi %c1_i32_0, %arg1 : i32
    %3 = arith.muli %arg0, %2 : i32
    %4 = arith.addi %1, %3 : i32
    %c0_i32 = arith.constant 0 : i32
    %c0_i32_1 = arith.constant 0 : i32
    %c0_i32_2 = arith.constant 0 : i32
    return %4, %c0_i32, %c0_i32_1 : i32, i32, i32
  }
  func.func @transform_1(%arg0: i32, %arg1: i32) -> (i32, i32, i32) {
    %c0_i32 = arith.constant 0 : i32
    %c0_i32_0 = arith.constant 0 : i32
    %c0_i32_1 = arith.constant 0 : i32
    return %arg0, %c0_i32, %c0_i32_0 : i32, i32, i32
  }
  func.func @transform_2(%arg0: i32, %arg1: i32) -> (i32, i32, i32) {
    %c0_i32 = arith.constant 0 : i32
    %c0_i32_0 = arith.constant 0 : i32
    %c0_i32_1 = arith.constant 0 : i32
    return %arg0, %c0_i32, %c0_i32_0 : i32, i32, i32
  }
  func.func @transform_3(%arg0: i32, %arg1: i32) -> (i32, i32, i32) {
    %c0_i32 = arith.constant 0 : i32
    %c0_i32_0 = arith.constant 0 : i32
    %c0_i32_1 = arith.constant 0 : i32
    return %arg0, %c0_i32, %c0_i32_0 : i32, i32, i32
  }
  func.func @transform_4(%arg0: i32, %arg1: i32) -> (i32, i32, i32, i32) {
    %c1_i32 = arith.constant 1 : i32
    %0 = arith.subi %c1_i32, %arg0 : i32
    %1 = arith.muli %0, %arg1 : i32
    %c1_i32_0 = arith.constant 1 : i32
    %2 = arith.subi %c1_i32_0, %arg1 : i32
    %3 = arith.muli %arg0, %2 : i32
    %4 = arith.addi %1, %3 : i32
    %c0_i32 = arith.constant 0 : i32
    %c0_i32_1 = arith.constant 0 : i32
    %c0_i32_2 = arith.constant 0 : i32
    return %arg0, %4, %c0_i32, %c0_i32_1 : i32, i32, i32, i32
  }
}

module attributes {stable_mosaic.version = 11 : i64} {
  func.func @_head_kernel(%arg0: i32, %arg1: i32, %arg2: memref<4xf32, #tpu.memory_space<smem>>, %arg3: memref<64x32xf32, #tpu.memory_space<vmem>>, %arg4: memref<64x32xf32, #tpu.memory_space<vmem>>, %arg5: memref<64x32xf32, #tpu.memory_space<vmem>>, %arg6: memref<32x128xf32, #tpu.memory_space<vmem>>, %arg7: memref<1x128xf32, #tpu.memory_space<vmem>>, %arg8: memref<64x128xf32, #tpu.memory_space<vmem>>, %arg9: memref<64x32xf32, #tpu.memory_space<vmem>>) attributes {dimension_semantics = [#tpu.dimension_semantics<parallel>, #tpu.dimension_semantics<arbitrary>], iteration_bounds = array<i64: 1, 1>, scalar_prefetch = 0 : i64, scratch_operands = 0 : i64, tpu.core_type = #tpu.core_type<tc>, window_params = [{transform_indices = @transform_0, window_bounds = array<i64: 4>}, {transform_indices = @transform_1, window_bounds = array<i64: 64, 32>}, {transform_indices = @transform_2, window_bounds = array<i64: 64, 32>}, {transform_indices = @transform_3, window_bounds = array<i64: 64, 32>}, {transform_indices = @transform_4, window_bounds = array<i64: 32, 128>}, {transform_indices = @transform_5, window_bounds = array<i64: 1, 128>}, {transform_indices = @transform_6, window_bounds = array<i64: 64, 128>}, {transform_indices = @transform_7, window_bounds = array<i64: 64, 32>}]} {
    %c0_i32 = arith.constant 0 : i32
    %0 = arith.cmpi eq, %arg1, %c0_i32 : i32
    %1 = arith.extui %0 : i1 to i32
    %c0_i32_0 = arith.constant 0 : i32
    %2 = arith.cmpi ne, %1, %c0_i32_0 : i32
    scf.if %2 {
      %c0_8 = arith.constant 0 : index
      %10 = memref.load %arg2[%c0_8] : memref<4xf32, #tpu.memory_space<smem>>
      %c1 = arith.constant 1 : index
      %11 = memref.load %arg2[%c1] : memref<4xf32, #tpu.memory_space<smem>>
      %c2 = arith.constant 2 : index
      %12 = memref.load %arg2[%c2] : memref<4xf32, #tpu.memory_space<smem>>
      %c3 = arith.constant 3 : index
      %13 = memref.load %arg2[%c3] : memref<4xf32, #tpu.memory_space<smem>>
      %c0_9 = arith.constant 0 : index
      %c0_10 = arith.constant 0 : index
      %14 = vector.load %arg4[%c0_9, %c0_10] : memref<64x32xf32, #tpu.memory_space<vmem>>, vector<64x32xf32>
      %15 = vector.broadcast %10 : f32 to vector<64x32xf32>
      %16 = arith.mulf %15, %14 : vector<64x32xf32>
      %c0_11 = arith.constant 0 : index
      %c0_12 = arith.constant 0 : index
      %17 = vector.load %arg5[%c0_11, %c0_12] : memref<64x32xf32, #tpu.memory_space<vmem>>, vector<64x32xf32>
      %18 = vector.broadcast %11 : f32 to vector<64x32xf32>
      %19 = arith.mulf %18, %17 : vector<64x32xf32>
      %20 = arith.addf %16, %19 : vector<64x32xf32>
      %c0_13 = arith.constant 0 : index
      %c0_14 = arith.constant 0 : index
      %21 = vector.load %arg3[%c0_13, %c0_14] : memref<64x32xf32, #tpu.memory_space<vmem>>, vector<64x32xf32>
      %22 = vector.broadcast %12 : f32 to vector<64x32xf32>
      %23 = arith.mulf %22, %21 : vector<64x32xf32>
      %24 = arith.addf %20, %23 : vector<64x32xf32>
      %25 = vector.broadcast %13 : f32 to vector<64x32xf32>
      %26 = arith.mulf %25, %24 : vector<64x32xf32>
      %c0_15 = arith.constant 0 : index
      %c0_16 = arith.constant 0 : index
      %27 = vector.load %arg9[%c0_15, %c0_16] : memref<64x32xf32, #tpu.memory_space<vmem>>, vector<64x32xf32>
      tpu.vector_store %arg9[%c0_15, %c0_16], %26 {strides = array<i32>} : memref<64x32xf32, #tpu.memory_space<vmem>>, vector<64x32xf32>,
    } else {
    }
    %c0 = arith.constant 0 : index
    %c0_1 = arith.constant 0 : index
    %3 = vector.load %arg3[%c0, %c0_1] : memref<64x32xf32, #tpu.memory_space<vmem>>, vector<64x32xf32>
    %c0_2 = arith.constant 0 : index
    %c0_3 = arith.constant 0 : index
    %4 = vector.load %arg6[%c0_2, %c0_3] : memref<32x128xf32, #tpu.memory_space<vmem>>, vector<32x128xf32>
    %cst = arith.constant dense<0.000000e+00> : vector<64x128xf32>
    %5 = tpu.matmul %3, %4, %cst {dimension_numbers = #tpu.dot_dimension_numbers<[1], [0], [0], [1], [0, 0, 1, 1], [], []>} : vector<64x32xf32>, vector<32x128xf32>, vector<64x128xf32> -> vector<64x128xf32>
    %c0_4 = arith.constant 0 : index
    %c0_5 = arith.constant 0 : index
    %6 = vector.load %arg7[%c0_4, %c0_5] : memref<1x128xf32, #tpu.memory_space<vmem>>, vector<1x128xf32>
    %7 = vector.broadcast %6 : vector<1x128xf32> to vector<64x128xf32>
    %8 = arith.addf %5, %7 : vector<64x128xf32>
    %c0_6 = arith.constant 0 : index
    %c0_7 = arith.constant 0 : index
    %9 = vector.load %arg8[%c0_6, %c0_7] : memref<64x128xf32, #tpu.memory_space<vmem>>, vector<64x128xf32>
    tpu.vector_store %arg8[%c0_6, %c0_7], %8 {strides = array<i32>} : memref<64x128xf32, #tpu.memory_space<vmem>>, vector<64x128xf32>,
    return
  }
  func.func @transform_0(%arg0: i32, %arg1: i32) -> i32 {
    %c0_i32 = arith.constant 0 : i32
    %c0_i32_0 = arith.constant 0 : i32
    return %c0_i32 : i32
  }
  func.func @transform_1(%arg0: i32, %arg1: i32) -> (i32, i32) {
    %c0_i32 = arith.constant 0 : i32
    %c0_i32_0 = arith.constant 0 : i32
    return %arg0, %c0_i32 : i32, i32
  }
  func.func @transform_2(%arg0: i32, %arg1: i32) -> (i32, i32) {
    %c0_i32 = arith.constant 0 : i32
    %c0_i32_0 = arith.constant 0 : i32
    return %arg0, %c0_i32 : i32, i32
  }
  func.func @transform_3(%arg0: i32, %arg1: i32) -> (i32, i32) {
    %c0_i32 = arith.constant 0 : i32
    %c0_i32_0 = arith.constant 0 : i32
    return %arg0, %c0_i32 : i32, i32
  }
  func.func @transform_4(%arg0: i32, %arg1: i32) -> (i32, i32) {
    %c0_i32 = arith.constant 0 : i32
    %c0_i32_0 = arith.constant 0 : i32
    return %c0_i32, %arg1 : i32, i32
  }
  func.func @transform_5(%arg0: i32, %arg1: i32) -> (i32, i32) {
    %c0_i32 = arith.constant 0 : i32
    %c0_i32_0 = arith.constant 0 : i32
    return %c0_i32, %arg1 : i32, i32
  }
  func.func @transform_6(%arg0: i32, %arg1: i32) -> (i32, i32) {
    %c0_i32 = arith.constant 0 : i32
    return %arg0, %arg1 : i32, i32
  }
  func.func @transform_7(%arg0: i32, %arg1: i32) -> (i32, i32) {
    %c0_i32 = arith.constant 0 : i32
    %c0_i32_0 = arith.constant 0 : i32
    return %arg0, %c0_i32 : i32, i32
  }
}

</mosaic_0001>

<llo_original>
// kernel: elmo_forward.5
$region0: #{elmo_forward.5}
  #allocation0 [shape = 'u32[]', space=smem, size = 0x4, offset = 0x4, fixed_abs, tag = 'smem constant byte address 0x4 - core index']
  #allocation1 [shape = 'u32[144,128]{1,0:T(1,128)}', space=vmem, size = 0x12000, scoped, tag = 'internal scratch']
  %s0 = inlined_call_operand.hbm [shape: f32[4], index: 0, kind: input, shape index: {}]
  %s1 = inlined_call_operand.hbm [shape: f32[64,32], index: 1, kind: input, shape index: {}]
  %s2 = inlined_call_operand.hbm [shape: f32[64,32], index: 2, kind: input, shape index: {}]
  %s3 = inlined_call_operand.hbm [shape: f32[64,32], index: 3, kind: input, shape index: {}]
  %s4 = inlined_call_operand.hbm [shape: f32[32,128], index: 4, kind: input, shape index: {}]
  %s5 = inlined_call_operand.hbm [shape: f32[1,128], index: 5, kind: input, shape index: {}]
  %s6 = inlined_call_operand.hbm [shape: f32[64,128], index: 6, kind: output, shape index: {0}]
  %s7 = inlined_call_operand.hbm [shape: f32[64,32], index: 7, kind: output, shape index: {1}]
  %8 = xla_tuple %s6, %s7
  %s9 = sld [smem:[#allocation0]]
  $region70: #{elmo_forward.5} parent=0
    _
  %s11 = ssub.s32 1, %s9
  %s12 = scalar_select 0, %s11, %s9
  $region1: #{elmo_forward.5} parent=0
    #allocation2 [shape = 'u8[512]{0}', space=smem, size = 0x200, scoped, tag = 'input window, operand 0, single buffered']
    #allocation3 [shape = 's32[1]{0}', space=sflag, size = 0x4, scoped, tag = 'scoped memory for elmo_forward.5']
    #allocation4 [shape = 's32[1]{0}', space=sflag, size = 0x4, scoped, tag = 'scoped memory for elmo_forward.5']
    #allocation5 [shape = 's32[1]{0}', space=sflag, size = 0x4, scoped, tag = 'scoped memory for elmo_forward.5']
    #allocation6 [shape = 'u8[32768]{0}', space=vmem, size = 0x8000, scoped, tag = 'input window, operand 1, single buffered']
    #allocation7 [shape = 'u8[32768]{0}', space=vmem, size = 0x8000, scoped, tag = 'input window, operand 2, single buffered']
    #allocation8 [shape = 's32[1]{0}', space=sflag, size = 0x4, scoped, tag = 'scoped memory for elmo_forward.5']
    #allocation9 [shape = 'u8[32768]{0}', space=vmem, size = 0x8000, scoped, tag = 'input window, operand 3, single buffered']
    #allocation10 [shape = 'u8[16384]{0}', space=vmem, size = 0x4000, scoped, tag = 'input window, operand 4, single buffered']
    #allocation11 [shape = 's32[1]{0}', space=sflag, size = 0x4, scoped, tag = 'scoped memory for elmo_forward.5']
    #allocation12 [shape = 'u8[512]{0}', space=vmem, size = 0x400, scoped, tag = 'input window, operand 5, single buffered']
    #allocation13 [shape = 'u8[32768]{0}', space=vmem, size = 0x8000, scoped, tag = 'output window, operand 0, single buffered']
    #allocation14 [shape = 'u8[32768]{0}', space=vmem, size = 0x8000, scoped, tag = 'output window, operand 1, single buffered']
    #allocation15 [shape = 's32[1]{0}', space=sflag, size = 0x4, scoped, tag = 'scoped memory for elmo_forward.5']
    %13 = vsyncpa [#allocation5], 0
    %14 = vsyncpa [#allocation3], 0
    %15 = vsyncpa [#allocation8], 0
    %16 = vsyncpa [#allocation11], 0
    %17 = vsyncpa [#allocation4], 0
    %18 = vsyncpa [#allocation15], 0
    // Predicated region
    $region2: #{elmo_forward.5} parent=1 // pred_check
      _
    $region3: #{elmo_forward.5} parent=1 // pred_check_branch
      %20 = sbr.rel (0) target = $region5
    $region4: #{elmo_forward.5} parent=1 // pred_region
      %s22 = ssub.s32 16, 16
      %23 = vsyncadd [#allocation5], %s22
      %26 = dma.hbm_to_smem %s0, 16, [#allocation2], [#allocation5]
    $region5: #{elmo_forward.5} parent=1 // pred_fallthru
      _
    // Predicated region
    $region6: #{elmo_forward.5} parent=1 // pred_check
      _
    $region7: #{elmo_forward.5} parent=1 // pred_check_branch
      %28 = sbr.rel (0) target = $region9
    $region8: #{elmo_forward.5} parent=1 // pred_region
      %s30 = ssub.s32 1024, 1024
      %31 = vsyncadd [#allocation3], %s30
      %s32 = sshll.u32 [#allocation6], 4
      %s33 = int_to_ptr.vmem [resolvable:$true] %s32
      %38 = dma.hbm_to_vmem [thread:$0]  %s1, 1024, %s33, [#allocation3], 128, 128, 8
    $region9: #{elmo_forward.5} parent=1 // pred_fallthru
      _
    // Predicated region
    $region10: #{elmo_forward.5} parent=1 // pred_check
      _
    $region11: #{elmo_forward.5} parent=1 // pred_check_branch
      %40 = sbr.rel (0) target = $region13
    $region12: #{elmo_forward.5} parent=1 // pred_region
      %s42 = ssub.s32 1024, 1024
      %43 = vsyncadd [#allocation8], %s42
      %s44 = sshll.u32 [#allocation7], 4
      %s45 = int_to_ptr.vmem [resolvable:$true] %s44
      %50 = dma.hbm_to_vmem [thread:$0]  %s2, 1024, %s45, [#allocation8], 128, 128, 8
    $region13: #{elmo_forward.5} parent=1 // pred_fallthru
      _
    // Predicated region
    $region14: #{elmo_forward.5} parent=1 // pred_check
      _
    $region15: #{elmo_forward.5} parent=1 // pred_check_branch
      %52 = sbr.rel (0) target = $region17
    $region16: #{elmo_forward.5} parent=1 // pred_region
      %s54 = ssub.s32 1024, 1024
      %55 = vsyncadd [#allocation8], %s54
      %s56 = sshll.u32 [#allocation9], 4
      %s57 = int_to_ptr.vmem [resolvable:$true] %s56
      %62 = dma.hbm_to_vmem [thread:$0]  %s3, 1024, %s57, [#allocation8], 128, 128, 8
    $region17: #{elmo_forward.5} parent=1 // pred_fallthru
      _
    // Predicated region
    $region18: #{elmo_forward.5} parent=1 // pred_check
      _
    $region19: #{elmo_forward.5} parent=1 // pred_check_branch
      %64 = sbr.rel (0) target = $region21
    $region20: #{elmo_forward.5} parent=1 // pred_region
      %s66 = ssub.s32 512, 512
      %67 = vsyncadd [#allocation11], %s66
      %s68 = sshll.u32 [#allocation10], 4
      %s69 = int_to_ptr.vmem [resolvable:$true] %s68
      %74 = dma.hbm_to_vmem [thread:$0]  %s4, 512, %s69, [#allocation11], 128, 128, 8
    $region21: #{elmo_forward.5} parent=1 // pred_fallthru
      _
    // Predicated region
    $region22: #{elmo_forward.5} parent=1 // pred_check
      _
    $region23: #{elmo_forward.5} parent=1 // pred_check_branch
      %76 = sbr.rel (0) target = $region25
    $region24: #{elmo_forward.5} parent=1 // pred_region
      %s78 = ssub.s32 16, 16
      %79 = vsyncadd [#allocation11], %s78
      %s81 = sshll.u32 [#allocation12], 4
      %s82 = int_to_ptr.vmem [resolvable:$true] %s81
      %84 = dma.hbm_to_vmem [thread:$0]  %s5, 16, %s82, [#allocation11]
    $region25: #{elmo_forward.5} parent=1 // pred_fallthru
      _
    // Predicated region
    $region26: #{elmo_forward.5} parent=1 // pred_check
      _
    $region27: #{elmo_forward.5} parent=1 // pred_check_branch
      %86 = sbr.rel (0) target = $region29
    $region28: #{elmo_forward.5} parent=1 // pred_region
      %87 = dma.done [#allocation5], 16
    $region29: #{elmo_forward.5} parent=1 // pred_fallthru
      _
    // Predicated region
    $region30: #{elmo_forward.5} parent=1 // pred_check
      _
    $region31: #{elmo_forward.5} parent=1 // pred_check_branch
      %89 = sbr.rel (0) target = $region33
    $region32: #{elmo_forward.5} parent=1 // pred_region
      %90 = dma.done [#allocation3], 1024
    $region33: #{elmo_forward.5} parent=1 // pred_fallthru
      _
    // Predicated region
    $region34: #{elmo_forward.5} parent=1 // pred_check
      _
    $region35: #{elmo_forward.5} parent=1 // pred_check_branch
      %92 = sbr.rel (0) target = $region37
    $region36: #{elmo_forward.5} parent=1 // pred_region
      %93 = dma.done [#allocation8], 1024
    $region37: #{elmo_forward.5} parent=1 // pred_fallthru
      _
    // Predicated region
    $region38: #{elmo_forward.5} parent=1 // pred_check
      _
    $region39: #{elmo_forward.5} parent=1 // pred_check_branch
      %95 = sbr.rel (0) target = $region41
    $region40: #{elmo_forward.5} parent=1 // pred_region
      %96 = dma.done [#allocation8], 1024
    $region41: #{elmo_forward.5} parent=1 // pred_fallthru
      _
    // Predicated region
    $region42: #{elmo_forward.5} parent=1 // pred_check
      _
    $region43: #{elmo_forward.5} parent=1 // pred_check_branch
      %98 = sbr.rel (0) target = $region45
    $region44: #{elmo_forward.5} parent=1 // pred_region
      %99 = dma.done [#allocation11], 512
    $region45: #{elmo_forward.5} parent=1 // pred_fallthru
      _
    // Predicated region
    $region46: #{elmo_forward.5} parent=1 // pred_check
      _
    $region47: #{elmo_forward.5} parent=1 // pred_check_branch
      %101 = sbr.rel (0) target = $region49
    $region48: #{elmo_forward.5} parent=1 // pred_region
      %102 = dma.done [#allocation11], 16
    $region49: #{elmo_forward.5} parent=1 // pred_fallthru
      _
    %103 = sfence
    %p104 = scmp.eq.s32.totalorder 0, 0
    // Predicated region
    $region50: #{elmo_forward.5} parent=1 // pred_check
      %p105 = pneg %p104
    $region51: #{elmo_forward.5} parent=1 // pred_check_branch
      %107 = sbr.rel (%p105) target = $region53
    $region52: #{elmo_forward.5} parent=1 // pred_region
      %s108 = sld [smem:[#allocation2]]
      %s109 = sld [smem:[#allocation2 + $0x1]]
      %s110 = sld [smem:[#allocation2 + $0x2]]
      %s111 = sld [smem:[#allocation2 + $0x3]]
      %v112 = vld [vmem:[#allocation7] sm:$0xff]
      %v113 = vld [vmem:[#allocation7 + $0x8] sm:$0xff]
      %v114 = vld [vmem:[#allocation7 + $0x10] sm:$0xff]
      %v115 = vld [vmem:[#allocation7 + $0x18] sm:$0xff]
      %v116 = vld [vmem:[#allocation7 + $0x20] sm:$0xff]
      %v117 = vld [vmem:[#allocation7 + $0x28] sm:$0xff]
      %v118 = vld [vmem:[#allocation7 + $0x30] sm:$0xff]
      %v119 = vld [vmem:[#allocation7 + $0x38] sm:$0xff]
      %v120 = vstv %s108
      %v121 = vmul.f32 %v120, %v112
      %v122 = vmul.f32 %v120, %v113
      %v123 = vmul.f32 %v120, %v114
      %v124 = vmul.f32 %v120, %v115
      %v125 = vmul.f32 %v120, %v116
      %v126 = vmul.f32 %v120, %v117
      %v127 = vmul.f32 %v120, %v118
      %v128 = vmul.f32 %v120, %v119
      %v129 = vld [vmem:[#allocation9] sm:$0xff]
      %v130 = vld [vmem:[#allocation9 + $0x8] sm:$0xff]
      %v131 = vld [vmem:[#allocation9 + $0x10] sm:$0xff]
      %v132 = vld [vmem:[#allocation9 + $0x18] sm:$0xff]
      %v133 = vld [vmem:[#allocation9 + $0x20] sm:$0xff]
      %v134 = vld [vmem:[#allocation9 + $0x28] sm:$0xff]
      %v135 = vld [vmem:[#allocation9 + $0x30] sm:$0xff]
      %v136 = vld [vmem:[#allocation9 + $0x38] sm:$0xff]
      %v137 = vstv %s109
      %v138 = vmul.f32 %v137, %v129
      %v139 = vmul.f32 %v137, %v130
      %v140 = vmul.f32 %v137, %v131
      %v141 = vmul.f32 %v137, %v132
      %v142 = vmul.f32 %v137, %v133
      %v143 = vmul.f32 %v137, %v134
      %v144 = vmul.f32 %v137, %v135
      %v145 = vmul.f32 %v137, %v136
      %v146 = vadd.f32 %v121, %v138
      %v147 = vadd.f32 %v122, %v139
      %v148 = vadd.f32 %v123, %v140
      %v149 = vadd.f32 %v124, %v141
      %v150 = vadd.f32 %v125, %v142
      %v151 = vadd.f32 %v126, %v143
      %v152 = vadd.f32 %v127, %v144
      %v153 = vadd.f32 %v128, %v145
      %v154 = vld [vmem:[#allocation6] sm:$0xff]
      %v155 = vld [vmem:[#allocation6 + $0x8] sm:$0xff]
      %v156 = vld [vmem:[#allocation6 + $0x10] sm:$0xff]
      %v157 = vld [vmem:[#allocation6 + $0x18] sm:$0xff]
      %v158 = vld [vmem:[#allocation6 + $0x20] sm:$0xff]
      %v159 = vld [vmem:[#allocation6 + $0x28] sm:$0xff]
      %v160 = vld [vmem:[#allocation6 + $0x30] sm:$0xff]
      %v161 = vld [vmem:[#allocation6 + $0x38] sm:$0xff]
      %v162 = vstv %s110
      %v163 = vmul.f32 %v162, %v154
      %v164 = vmul.f32 %v162, %v155
      %v165 = vmul.f32 %v162, %v156
      %v166 = vmul.f32 %v162, %v157
      %v167 = vmul.f32 %v162, %v158
      %v168 = vmul.f32 %v162, %v159
      %v169 = vmul.f32 %v162, %v160
      %v170 = vmul.f32 %v162, %v161
      %v171 = vadd.f32 %v146, %v163
      %v172 = vadd.f32 %v147, %v164
      %v173 = vadd.f32 %v148, %v165
      %v174 = vadd.f32 %v149, %v166
      %v175 = vadd.f32 %v150, %v167
      %v176 = vadd.f32 %v151, %v168
      %v177 = vadd.f32 %v152, %v169
      %v178 = vadd.f32 %v153, %v170
      %v179 = vstv %s111
      %v180 = vmul.f32 %v179, %v171
      %v181 = vmul.f32 %v179, %v172
      %v182 = vmul.f32 %v179, %v173
      %v183 = vmul.f32 %v179, %v174
      %v184 = vmul.f32 %v179, %v175
      %v185 = vmul.f32 %v179, %v176
      %v186 = vmul.f32 %v179, %v177
      %v187 = vmul.f32 %v179, %v178
      %vm188 = vcmask 261120
      %189 = vst.msk [vmem:[#allocation14] sm:$0xff] %vm188, %v180
      %190 = vst.msk [vmem:[#allocation14 + $0x8] sm:$0xff] %vm188, %v181
      %191 = vst.msk [vmem:[#allocation14 + $0x10] sm:$0xff] %vm188, %v182
      %192 = vst.msk [vmem:[#allocation14 + $0x18] sm:$0xff] %vm188, %v183
      %193 = vst.msk [vmem:[#allocation14 + $0x20] sm:$0xff] %vm188, %v184
      %194 = vst.msk [vmem:[#allocation14 + $0x28] sm:$0xff] %vm188, %v185
      %195 = vst.msk [vmem:[#allocation14 + $0x30] sm:$0xff] %vm188, %v186
      %196 = vst.msk [vmem:[#allocation14 + $0x38] sm:$0xff] %vm188, %v187
    $region53: #{elmo_forward.5} parent=1 // pred_fallthru
      _
    %v197 = vld [vmem:[#allocation6] sm:$0xff]
    %v198 = vld [vmem:[#allocation6 + $0x8] sm:$0xff]
    %v199 = vld [vmem:[#allocation6 + $0x10] sm:$0xff]
    %v200 = vld [vmem:[#allocation6 + $0x18] sm:$0xff]
    %v201 = vld [vmem:[#allocation6 + $0x20] sm:$0xff]
    %v202 = vld [vmem:[#allocation6 + $0x28] sm:$0xff]
    %v203 = vld [vmem:[#allocation6 + $0x30] sm:$0xff]
    %v204 = vld [vmem:[#allocation6 + $0x38] sm:$0xff]
    %v205 = vld [vmem:[#allocation10] sm:$0xff]
    %v206 = vld [vmem:[#allocation10 + $0x8] sm:$0xff]
    %v207 = vld [vmem:[#allocation10 + $0x10] sm:$0xff]
    %v208 = vld [vmem:[#allocation10 + $0x18] sm:$0xff]
    %v209 = vld [vmem:[#allocation12] sm:$0x1]
    %v211 = vlaneseq
    %v212 = vshrl.u32 %v211, 7
    %v213 = vsub.s32 0, %v212
    %v214 = vrot.slane %v209, %v213
    %vm216 = vcmask 261120
    %v218 = vsel %vm216, %v197, 0
    %v221 = vsel %vm216, %v198, 0
    %v224 = vsel %vm216, %v199, 0
    %v227 = vsel %vm216, %v200, 0
    %v230 = vsel %vm216, %v201, 0
    %v233 = vsel %vm216, %v202, 0
    %v236 = vsel %vm216, %v203, 0
    %v239 = vsel %vm216, %v204, 0
    %241 = vmatprep.subr.mxu0 0.0
    %242 = vmatpush1.msra.mxu0 %v205
    %243 = vmatprep.subr.mxu0 0.0
    %244 = vmatpush1.msra.mxu0 %v206
    %245 = vmatprep.subr.mxu0 0.0
    %246 = vmatpush1.msra.mxu0 %v207
    %247 = vmatprep.subr.mxu0 0.0
    %248 = vmatpush1.msra.mxu0 %v208
    %249 = vmatprep.subr.mxu0 0.0
    %250 = vmatpush1.msra.mxu0 0.0
    %251 = vmatprep.subr.mxu0 0.0
    %252 = vmatpush1.msra.mxu0 0.0
    %253 = vmatprep.subr.mxu0 0.0
    %254 = vmatpush1.msra.mxu0 0.0
    %255 = vmatprep.subr.mxu0 0.0
    %256 = vmatpush1.msra.mxu0 0.0
    %257 = vmatprep.subr.mxu0 0.0
    %258 = vmatpush1.msra.mxu0 0.0
    %259 = vmatprep.subr.mxu0 0.0
    %260 = vmatpush1.msra.mxu0 0.0
    %261 = vmatprep.subr.mxu0 0.0
    %262 = vmatpush1.msra.mxu0 0.0
    %263 = vmatprep.subr.mxu0 0.0
    %264 = vmatpush1.msra.mxu0 0.0
    %265 = vmatprep.subr.mxu0 0.0
    %266 = vmatpush1.msra.mxu0 0.0
    %267 = vmatprep.subr.mxu0 0.0
    %268 = vmatpush1.msra.mxu0 0.0
    %269 = vmatprep.subr.mxu0 0.0
    %270 = vmatpush1.msra.mxu0 0.0
    %271 = vmatprep.subr.mxu0 0.0
    %272 = vmatpush1.msra.mxu0 0.0
    %273 = vmatprep.subr.mxu0 0.0
    %274 = vmatpush1.msra.mxu0 0.0
    %275 = vmatprep.subr.mxu0 0.0
    %276 = vmatpush1.msra.mxu0 0.0
    %277 = vmatprep.subr.mxu0 0.0
    %278 = vmatpush1.msra.mxu0 0.0
    %279 = vmatprep.subr.mxu0 0.0
    %280 = vmatpush1.msra.mxu0 0.0
    %281 = vmatprep.subr.mxu0 0.0
    %282 = vmatpush1.msra.mxu0 0.0
    %283 = vmatprep.subr.mxu0 0.0
    %284 = vmatpush1.msra.mxu0 0.0
    %285 = vmatprep.subr.mxu0 0.0
    %286 = vmatpush1.msra.mxu0 0.0
    %287 = vmatprep.subr.mxu0 0.0
    %288 = vmatpush1.msra.mxu0 0.0
    %289 = vmatprep.subr.mxu0 0.0
    %290 = vmatpush1.msra.mxu0 0.0
    %291 = vmatprep.subr.mxu0 0.0
    %292 = vmatpush1.msra.mxu0 0.0
    %293 = vmatprep.subr.mxu0 0.0
    %294 = vmatpush1.msra.mxu0 0.0
    %295 = vmatprep.subr.mxu0 0.0
    %296 = vmatpush1.msra.mxu0 0.0
    %297 = vmatprep.subr.mxu0 0.0
    %298 = vmatpush1.msra.mxu0 0.0
    %299 = vmatprep.subr.mxu0 0.0
    %300 = vmatpush1.msra.mxu0 0.0
    %301 = vmatprep.subr.mxu0 0.0
    %302 = vmatpush1.msra.mxu0 0.0
    %303 = vmatprep.subr.mxu0 0.0
    %304 = vmatpush1.msra.mxu0 0.0
    %305 = vmatprep.mubr.f32.mxu0 0.0
    %306 = vmatmul.mubr.f32.gmra.mrb[0].mxu0 %v218
    %v307 = vpop.f32.mrb[0].mxu0
    %v308 = vadd.f32 %v214, %v307
    %v309 = vpop.f32.mrb[0].mxu0
    %310 = vmatprep.mubr.f32.mxu0 0.0
    %311 = vmatmul.mubr.f32.gmra.mrb[0].mxu0 %v221
    %v312 = vpop.f32.mrb[0].mxu0
    %v313 = vadd.f32 %v214, %v312
    %v314 = vpop.f32.mrb[0].mxu0
    %315 = vmatprep.mubr.f32.mxu0 0.0
    %316 = vmatmul.mubr.f32.gmra.mrb[0].mxu0 %v224
    %v317 = vpop.f32.mrb[0].mxu0
    %v318 = vadd.f32 %v214, %v317
    %v319 = vpop.f32.mrb[0].mxu0
    %320 = vmatprep.mubr.f32.mxu0 0.0
    %321 = vmatmul.mubr.f32.gmra.mrb[0].mxu0 %v227
    %v322 = vpop.f32.mrb[0].mxu0
    %v323 = vadd.f32 %v214, %v322
    %v324 = vpop.f32.mrb[0].mxu0
    %325 = vmatprep.mubr.f32.mxu0 0.0
    %326 = vmatmul.mubr.f32.gmra.mrb[0].mxu0 %v230
    %v327 = vpop.f32.mrb[0].mxu0
    %v328 = vadd.f32 %v214, %v327
    %v329 = vpop.f32.mrb[0].mxu0
    %330 = vmatprep.mubr.f32.mxu0 0.0
    %331 = vmatmul.mubr.f32.gmra.mrb[0].mxu0 %v233
    %v332 = vpop.f32.mrb[0].mxu0
    %v333 = vadd.f32 %v214, %v332
    %v334 = vpop.f32.mrb[0].mxu0
    %335 = vmatprep.mubr.f32.mxu0 0.0
    %336 = vmatmul.mubr.f32.gmra.mrb[0].mxu0 %v236
    %v337 = vpop.f32.mrb[0].mxu0
    %v338 = vadd.f32 %v214, %v337
    %v339 = vpop.f32.mrb[0].mxu0
    %340 = vmatprep.mubr.f32.mxu0 0.0
    %341 = vmatmul.mubr.f32.gmra.mrb[0].mxu0 %v239
    %v342 = vpop.f32.mrb[0].mxu0
    %v343 = vadd.f32 %v214, %v342
    %v344 = vpop.f32.mrb[0].mxu0
    %345 = vdwg.mxu0
    %346 = vst [vmem:[#allocation13] sm:$0xff] %v308
    %347 = vst [vmem:[#allocation13 + $0x8] sm:$0xff] %v313
    %348 = vst [vmem:[#allocation13 + $0x10] sm:$0xff] %v318
    %349 = vst [vmem:[#allocation13 + $0x18] sm:$0xff] %v323
    %350 = vst [vmem:[#allocation13 + $0x20] sm:$0xff] %v328
    %351 = vst [vmem:[#allocation13 + $0x28] sm:$0xff] %v333
    %352 = vst [vmem:[#allocation13 + $0x30] sm:$0xff] %v338
    %353 = vst [vmem:[#allocation13 + $0x38] sm:$0xff] %v343
    // Predicated region
    $region54: #{elmo_forward.5} parent=1 // pred_check
      _
    $region55: #{elmo_forward.5} parent=1 // pred_check_branch
      %355 = sbr.rel (0) target = $region57
    $region56: #{elmo_forward.5} parent=1 // pred_region
      %s357 = ssub.s32 1024, 1024
      %358 = vsyncadd [#allocation4], %s357
      %s359 = sshll.u32 [#allocation13], 4
      %s360 = int_to_ptr.vmem [resolvable:$true] %s359
      %365 = dma.vmem_to_hbm [thread:$0]  %s360, 1024, %s6, [#allocation4], 128, 128, 8
    $region57: #{elmo_forward.5} parent=1 // pred_fallthru
      _
    // Predicated region
    $region58: #{elmo_forward.5} parent=1 // pred_check
      _
    $region59: #{elmo_forward.5} parent=1 // pred_check_branch
      %367 = sbr.rel (0) target = $region61
    $region60: #{elmo_forward.5} parent=1 // pred_region
      %s369 = ssub.s32 1024, 1024
      %370 = vsyncadd [#allocation15], %s369
      %s371 = sshll.u32 [#allocation14], 4
      %s372 = int_to_ptr.vmem [resolvable:$true] %s371
      %377 = dma.vmem_to_hbm [thread:$0]  %s372, 1024, %s7, [#allocation15], 128, 128, 8
    $region61: #{elmo_forward.5} parent=1 // pred_fallthru
      _
    // Predicated region
    $region62: #{elmo_forward.5} parent=1 // pred_check
      _
    $region63: #{elmo_forward.5} parent=1 // pred_check_branch
      %379 = sbr.rel (0) target = $region65
    $region64: #{elmo_forward.5} parent=1 // pred_region
      %380 = dma.done [#allocation4], 1024
    $region65: #{elmo_forward.5} parent=1 // pred_fallthru
      _
    // Predicated region
    $region66: #{elmo_forward.5} parent=1 // pred_check
      _
    $region67: #{elmo_forward.5} parent=1 // pred_check_branch
      %382 = sbr.rel (0) target = $region69
    $region68: #{elmo_forward.5} parent=1 // pred_region
      %383 = dma.done [#allocation15], 1024
    $region69: #{elmo_forward.5} parent=1 // pred_fallthru
      _
    %384 = vsyncpa [#allocation3], 1
    %385 = vsyncpa [#allocation8], 1
    %386 = vsyncpa [#allocation11], 1
    %387 = vsyncpa [#allocation4], 1
    %388 = vsyncpa [#allocation15], 1
    %389 = vsyncpa [#allocation5], 1

// kernel: elmo_forward.3
$region0: #{elmo_forward.3}
  #allocation0 [shape = 'u32[]', space=smem, size = 0x4, offset = 0x4, fixed_abs, tag = 'smem constant byte address 0x4 - core index']
  #allocation1 [shape = 'u32[144,128]{1,0:T(1,128)}', space=vmem, size = 0x12000, scoped, tag = 'internal scratch']
  #allocation2 [shape = 'f32[4,8,64]{2,1,0:T(8,128)}', space=vmem, size = 0x4000, scoped, tag = 'scratch operand']
  #allocation3 [shape = 'f32[8,16]{1,0:T(8,128)}', space=vmem, size = 0x1000, scoped, tag = 'scratch operand']
  #allocation4 [shape = 'f32[8,16]{1,0:T(8,128)}', space=vmem, size = 0x1000, scoped, tag = 'scratch operand']
  %s0 = inlined_call_operand.hbm [shape: f32[8,8,32], index: 0, kind: input, shape index: {}]
  %s1 = inlined_call_operand.hbm [shape: f32[2,32,64], index: 1, kind: input, shape index: {}]
  %s2 = inlined_call_operand.hbm [shape: f32[2,16,64], index: 2, kind: input, shape index: {}]
  %s3 = inlined_call_operand.hbm [shape: f32[2,1,64], index: 3, kind: input, shape index: {}]
  %s4 = inlined_call_operand.hbm [shape: f32[2,8,8,16], index: 4, kind: output, shape index: {}]
  %s5 = sld [smem:[#allocation0]]
  $region69: #{elmo_forward.3} parent=0
    _
  %s7 = ssub.s32 1, %s5
  %s8 = scalar_select 0, %s7, %s5
  $region1: #{elmo_forward.3} parent=0
    #allocation5 [shape = 'u8[32768]{0}', space=vmem, size = 0x8000, scoped, tag = 'input window, operand 0']
    #allocation6 [shape = 's32[2]{0}', space=sflag, size = 0x8, scoped, tag = 'scoped memory for elmo_forward.3']
    #allocation7 [shape = 's32[2]{0}', space=sflag, size = 0x8, scoped, tag = 'scoped memory for elmo_forward.3']
    #allocation8 [shape = 'u8[32768]{0}', space=vmem, size = 0x8000, scoped, tag = 'input window, operand 1']
    #allocation9 [shape = 's32[2]{0}', space=sflag, size = 0x8, scoped, tag = 'scoped memory for elmo_forward.3']
    #allocation10 [shape = 'u8[16384]{0}', space=vmem, size = 0x4000, scoped, tag = 'input window, operand 2']
    #allocation11 [shape = 'u8[1024]{0}', space=vmem, size = 0x400, scoped, tag = 'input window, operand 3']
    #allocation12 [shape = 's32[2]{0}', space=sflag, size = 0x8, scoped, tag = 'scoped memory for elmo_forward.3']
    #allocation13 [shape = 'u8[32768]{0}', space=vmem, size = 0x8000, scoped, tag = 'output window, operand 0']
    %9 = vsyncpa [#allocation6], 0
    %s10 = scalar_lea.sflag [#allocation6], 1
    %11 = vsyncpa %s10, 0
    %12 = vsyncpa [#allocation9], 0
    %s13 = scalar_lea.sflag [#allocation9], 1
    %14 = vsyncpa %s13, 0
    %15 = vsyncpa [#allocation12], 0
    %s16 = scalar_lea.sflag [#allocation12], 1
    %17 = vsyncpa %s16, 0
    %18 = vsyncpa [#allocation7], 0
    %s19 = scalar_lea.sflag [#allocation7], 1
    %20 = vsyncpa %s19, 0
    loop: start=0, step=1, limit=6
    $region2: #{elmo_forward.3} parent=1 // loop_pre_header
      _
    $region3: #{elmo_forward.3} parent=1 // loop_header
      %s22 = sphi 0, %s26
      %p23 = scmp.ge.s32.totalorder %s22, 6
      %s29 = sphi 0, %s41
      %s30 = sphi 0, %s37
      %s31 = sphi 0, %s29
      %s32 = sphi 0, %s30
      %s33 = sphi 0, %s31
      %s34 = sphi 0, %s32
      %s54 = sphi 0, %s56
      %s57 = sphi 0, %s54
      %s58 = sphi 0, %s57
      %s74 = sphi 0, %s58
      %s80 = sphi 0, %s82
      %s83 = sphi 0, %s80
      %s84 = sphi 0, %s83
      %s100 = sphi 0, %s84
      %s106 = sphi 0, %s108
      %s109 = sphi 0, %s106
      %s110 = sphi 0, %s109
      %s126 = sphi 0, %s110
      %s132 = sphi 0, %s134
      %s135 = sphi 0, %s132
      %s136 = sphi 0, %s135
      %s152 = sphi 0, %s136
      %s170 = sphi 0, %s172
      %s173 = sphi 0, %s170
      %s174 = sphi 0, %s173
      %s190 = sphi 0, %s174
    $region4: #{elmo_forward.3} parent=1 // loop_header_branch
      %25 = sbr.rel (%p23) target = $region8
    $region5: #{elmo_forward.3} parent=1 // loop_body
      %s27 = ssub.s32 %s22, 1
      %s28 = ssub.s32 %s22, 2
      %s35 = sadd.s32 1, %s30
      %p36 = scmp.ge.s32.totalorder %s35, 2
      %s37 = scalar_select %p36, 0, %s35
      %s38 = sadd.s32 1, %s29
      %s39 = scalar_select %p36, %s38, %s29
      %p40 = scmp.ge.s32.totalorder %s39, 2
      %s41 = scalar_select %p40, 0, %s39
      %s42 = ssub.s32 1, %s29
      %s43 = smul.u32 %s42, %s30
      %s44 = ssub.s32 1, %s30
      %s45 = smul.u32 %s29, %s44
      %s46 = sadd.s32 %s43, %s45
      %s47 = ssub.s32 1, %s41
      %s48 = smul.u32 %s47, %s37
      %s49 = ssub.s32 1, %s37
      %s50 = smul.u32 %s41, %s49
      %s51 = sadd.s32 %s48, %s50
      %s52 = ssub.s32 %s46, %s51
      %p53 = scmp.eq.s32.totalorder %s52, 0
      %s55 = sadd.s32 %s54, 1
      %s56 = scalar_select %p53, %s54, %s55
      %p59 = pneg %p53
      %p60 = scmp.eq.s32.totalorder %s22, 3
      %p61 = por %p59, %p60
      %p62 = scmp.ne.s32.totalorder %s54, %s57
      %p63 = scmp.eq.s32.totalorder %s22, 0
      %p64 = por %p62, %p63
      %p65 = scmp.ne.s32.totalorder %s54, %s57
      %p66 = scmp.eq.s32.totalorder %s27, 3
      %p67 = por %p65, %p66
      %p68 = scmp.ne.s32.totalorder %s57, %s58
      %p69 = scmp.eq.s32.totalorder %s27, 0
      %p70 = por %p68, %p69
      %p71 = scmp.ne.s32.totalorder %s57, %s58
      %p72 = scmp.eq.s32.totalorder %s28, 3
      %p73 = por %p71, %p72
      %p75 = scmp.ne.s32.totalorder %s58, %s74
      %p76 = scmp.eq.s32.totalorder %s28, 0
      %p77 = por %p75, %p76
      %s78 = ssub.s32 %s29, %s41
      %p79 = scmp.eq.s32.totalorder %s78, 0
      %s81 = sadd.s32 %s80, 1
      %s82 = scalar_select %p79, %s80, %s81
      %p85 = pneg %p79
      %p86 = scmp.eq.s32.totalorder %s22, 3
      %p87 = por %p85, %p86
      %p88 = scmp.ne.s32.totalorder %s80, %s83
      %p89 = scmp.eq.s32.totalorder %s22, 0
      %p90 = por %p88, %p89
      %p91 = scmp.ne.s32.totalorder %s80, %s83
      %p92 = scmp.eq.s32.totalorder %s27, 3
      %p93 = por %p91, %p92
      %p94 = scmp.ne.s32.totalorder %s83, %s84
      %p95 = scmp.eq.s32.totalorder %s27, 0
      %p96 = por %p94, %p95
      %p97 = scmp.ne.s32.totalorder %s83, %s84
      %p98 = scmp.eq.s32.totalorder %s28, 3
      %p99 = por %p97, %p98
      %p101 = scmp.ne.s32.totalorder %s84, %s100
      %p102 = scmp.eq.s32.totalorder %s28, 0
      %p103 = por %p101, %p102
      %s104 = ssub.s32 %s29, %s41
      %p105 = scmp.eq.s32.totalorder %s104, 0
      %s107 = sadd.s32 %s106, 1
      %s108 = scalar_select %p105, %s106, %s107
      %p111 = pneg %p105
      %p112 = scmp.eq.s32.totalorder %s22, 3
      %p113 = por %p111, %p112
      %p114 = scmp.ne.s32.totalorder %s106, %s109
      %p115 = scmp.eq.s32.totalorder %s22, 0
      %p116 = por %p114, %p115
      %p117 = scmp.ne.s32.totalorder %s106, %s109
      %p118 = scmp.eq.s32.totalorder %s27, 3
      %p119 = por %p117, %p118
      %p120 = scmp.ne.s32.totalorder %s109, %s110
      %p121 = scmp.eq.s32.totalorder %s27, 0
      %p122 = por %p120, %p121
      %p123 = scmp.ne.s32.totalorder %s109, %s110
      %p124 = scmp.eq.s32.totalorder %s28, 3
      %p125 = por %p123, %p124
      %p127 = scmp.ne.s32.totalorder %s110, %s126
      %p128 = scmp.eq.s32.totalorder %s28, 0
      %p129 = por %p127, %p128
      %s130 = ssub.s32 %s29, %s41
      %p131 = scmp.eq.s32.totalorder %s130, 0
      %s133 = sadd.s32 %s132, 1
      %s134 = scalar_select %p131, %s132, %s133
      %p137 = pneg %p131
      %p138 = scmp.eq.s32.totalorder %s22, 3
      %p139 = por %p137, %p138
      %p140 = scmp.ne.s32.totalorder %s132, %s135
      %p141 = scmp.eq.s32.totalorder %s22, 0
      %p142 = por %p140, %p141
      %p143 = scmp.ne.s32.totalorder %s132, %s135
      %p144 = scmp.eq.s32.totalorder %s27, 3
      %p145 = por %p143, %p144
      %p146 = scmp.ne.s32.totalorder %s135, %s136
      %p147 = scmp.eq.s32.totalorder %s27, 0
      %p148 = por %p146, %p147
      %p149 = scmp.ne.s32.totalorder %s135, %s136
      %p150 = scmp.eq.s32.totalorder %s28, 3
      %p151 = por %p149, %p150
      %p153 = scmp.ne.s32.totalorder %s136, %s152
      %p154 = scmp.eq.s32.totalorder %s28, 0
      %p155 = por %p153, %p154
      %s156 = ssub.s32 1, %s29
      %s157 = smul.u32 %s156, %s30
      %s158 = ssub.s32 1, %s30
      %s159 = smul.u32 %s29, %s158
      %s160 = sadd.s32 %s157, %s159
      %s161 = ssub.s32 1, %s41
      %s162 = smul.u32 %s161, %s37
      %s163 = ssub.s32 1, %s37
      %s164 = smul.u32 %s41, %s163
      %s165 = sadd.s32 %s162, %s164
      %s166 = ssub.s32 %s29, %s41
      %s167 = ssub.s32 %s160, %s165
      %s168 = sor.u32 %s166, %s167
      %p169 = scmp.eq.s32.totalorder %s168, 0
      %s171 = sadd.s32 %s170, 1
      %s172 = scalar_select %p169, %s170, %s171
      %p175 = pneg %p169
      %p176 = scmp.eq.s32.totalorder %s22, 3
      %p177 = por %p175, %p176
      %p178 = scmp.ne.s32.totalorder %s170, %s173
      %p179 = scmp.eq.s32.totalorder %s22, 0
      %p180 = por %p178, %p179
      %p181 = scmp.ne.s32.totalorder %s170, %s173
      %p182 = scmp.eq.s32.totalorder %s27, 3
      %p183 = por %p181, %p182
      %p184 = scmp.ne.s32.totalorder %s173, %s174
      %p185 = scmp.eq.s32.totalorder %s27, 0
      %p186 = por %p184, %p185
      %p187 = scmp.ne.s32.totalorder %s173, %s174
      %p188 = scmp.eq.s32.totalorder %s28, 3
      %p189 = por %p187, %p188
      %p191 = scmp.ne.s32.totalorder %s174, %s190
      %p192 = scmp.eq.s32.totalorder %s28, 0
      %p193 = por %p191, %p192
      %p194 = scmp.le.s32.totalorder 1, %s22
      %p195 = scmp.lt.s32.totalorder %s22, 5
      %p196 = pnand %p194, %p195
      %p197 = pneg %p196
      // Predicated region
      $region9: #{elmo_forward.3} parent=5 // pred_check
        _
      $region10: #{elmo_forward.3} parent=5 // pred_check_branch
        %199 = sbr.rel (%p196) target = $region12
      $region11: #{elmo_forward.3} parent=5 // pred_region
        %s200 = ssub.s32 %s22, 1
      $region12: #{elmo_forward.3} parent=5 // pred_fallthru
        _
      %p201 = scmp.lt.s32.totalorder %s22, 4
      // Predicated region
      $region13: #{elmo_forward.3} parent=5 // pred_check
        %p202 = pneg %p201
      $region14: #{elmo_forward.3} parent=5 // pred_check_branch
        %204 = sbr.rel (%p202) target = $region16
      $region15: #{elmo_forward.3} parent=5 // pred_region
        // Predicated region
        $region17: #{elmo_forward.3} parent=15 // pred_check
          %p205 = pneg %p64
        $region18: #{elmo_forward.3} parent=15 // pred_check_branch
          %207 = sbr.rel (%p205) target = $region20
        $region19: #{elmo_forward.3} parent=15 // pred_region
          %s208 = sand.u32 %s54, 1
          %s209 = scalar_lea.sflag [#allocation6], %s208
          %s210 = sand.u32 %s54, 1
          %s211 = smul.addr %s210, 32
          %s212 = scalar_lea.vmem [#allocation5], %s211
          %s213 = ssub.s32 1, %s29
          %s214 = smul.u32 %s213, %s30
          %s215 = ssub.s32 1, %s30
          %s216 = smul.u32 %s29, %s215
          %s217 = sadd.s32 %s214, %s216
          %s218 = smul.u32 4, %s217
          %s220 = ssub.s32 512, 512
          %221 = vsyncadd %s209, %s220
          %s222 = smul.addr %s218, 128
          %s223 = scalar_lea.hbm %s0, %s222
          %s224 = sshll.u32 %s212, 4
          %s225 = int_to_ptr.vmem [resolvable:$true] %s224
          %230 = dma.hbm_to_vmem [thread:$0]  %s223, 512, %s225, %s209, 128, 128, 8
        $region20: #{elmo_forward.3} parent=15 // pred_fallthru
          _
        // Predicated region
        $region21: #{elmo_forward.3} parent=15 // pred_check
          %p231 = pneg %p90
        $region22: #{elmo_forward.3} parent=15 // pred_check_branch
          %233 = sbr.rel (%p231) target = $region24
        $region23: #{elmo_forward.3} parent=15 // pred_region
          %s234 = sand.u32 %s22, 1
          %s235 = scalar_lea.sflag [#allocation9], %s234
          %s236 = sand.u32 %s80, 1
          %s237 = smul.addr %s236, 32
          %s238 = scalar_lea.vmem [#allocation8], %s237
          %s240 = ssub.s32 512, 512
          %241 = vsyncadd %s235, %s240
          %s242 = smul.addr %s29, 4
          %s243 = smul.addr %s242, 128
          %s244 = scalar_lea.hbm %s1, %s243
          %s245 = sshll.u32 %s238, 4
          %s246 = int_to_ptr.vmem [resolvable:$true] %s245
          %251 = dma.hbm_to_vmem [thread:$0]  %s244, 512, %s246, %s235, 128, 128, 8
        $region24: #{elmo_forward.3} parent=15 // pred_fallthru
          _
        // Predicated region
        $region25: #{elmo_forward.3} parent=15 // pred_check
          %p252 = pneg %p116
        $region26: #{elmo_forward.3} parent=15 // pred_check_branch
          %254 = sbr.rel (%p252) target = $region28
        $region27: #{elmo_forward.3} parent=15 // pred_region
          %s255 = sand.u32 %s22, 1
          %s256 = scalar_lea.sflag [#allocation9], %s255
          %s257 = sand.u32 %s106, 1
          %s258 = smul.addr %s257, 16
          %s259 = scalar_lea.vmem [#allocation10], %s258
          %s261 = ssub.s32 256, 256
          %262 = vsyncadd %s256, %s261
          %s263 = smul.addr %s29, 2
          %s264 = smul.addr %s263, 128
          %s265 = scalar_lea.hbm %s2, %s264
          %s266 = sshll.u32 %s259, 4
          %s267 = int_to_ptr.vmem [resolvable:$true] %s266
          %272 = dma.hbm_to_vmem [thread:$0]  %s265, 256, %s267, %s256, 128, 128, 8
        $region28: #{elmo_forward.3} parent=15 // pred_fallthru
          _
        // Predicated region
        $region29: #{elmo_forward.3} parent=15 // pred_check
          %p273 = pneg %p142
        $region30: #{elmo_forward.3} parent=15 // pred_check_branch
          %275 = sbr.rel (%p273) target = $region32
        $region31: #{elmo_forward.3} parent=15 // pred_region
          %s276 = sand.u32 %s132, 1
          %s277 = scalar_lea.sflag [#allocation12], %s276
          %s278 = sand.u32 %s132, 1
          %s279 = scalar_lea.vmem [#allocation11], %s278
          %s281 = ssub.s32 16, 16
          %282 = vsyncadd %s277, %s281
          %s283 = smul.addr %s29, 16
          %s284 = scalar_lea.hbm %s3, %s283
          %s286 = sshll.u32 %s279, 4
          %s287 = int_to_ptr.vmem [resolvable:$true] %s286
          %289 = dma.hbm_to_vmem [thread:$0]  %s284, 16, %s287, %s277
        $region32: #{elmo_forward.3} parent=15 // pred_fallthru
          _
      $region16: #{elmo_forward.3} parent=5 // pred_fallthru
        _
      %p290 = scmp.le.s32.totalorder 1, %s22
      %p291 = scmp.lt.s32.totalorder %s22, 5
      %p292 = pnand %p290, %p291
      %p293 = pneg %p292
      // Predicated region
      $region33: #{elmo_forward.3} parent=5 // pred_check
        _
      $region34: #{elmo_forward.3} parent=5 // pred_check_branch
        %295 = sbr.rel (%p292) target = $region36
      $region35: #{elmo_forward.3} parent=5 // pred_region
        %s296 = ssub.s32 %s22, 1
        %s297 = sand.u32 %s57, 1
        %s298 = scalar_lea.sflag [#allocation6], %s297
        %s299 = sand.u32 %s57, 1
        %s300 = smul.addr %s299, 32
        %s301 = scalar_lea.vmem [#allocation5], %s300
        // Predicated region
        $region37: #{elmo_forward.3} parent=35 // pred_check
          %p302 = pneg %p70
        $region38: #{elmo_forward.3} parent=35 // pred_check_branch
          %304 = sbr.rel (%p302) target = $region40
        $region39: #{elmo_forward.3} parent=35 // pred_region
          %305 = dma.done %s298, 512
        $region40: #{elmo_forward.3} parent=35 // pred_fallthru
          _
        %s306 = sand.u32 %s27, 1
        %s307 = scalar_lea.sflag [#allocation9], %s306
        %s308 = sand.u32 %s83, 1
        %s309 = smul.addr %s308, 32
        %s310 = scalar_lea.vmem [#allocation8], %s309
        // Predicated region
        $region41: #{elmo_forward.3} parent=35 // pred_check
          %p311 = pneg %p96
        $region42: #{elmo_forward.3} parent=35 // pred_check_branch
          %313 = sbr.rel (%p311) target = $region44
        $region43: #{elmo_forward.3} parent=35 // pred_region
          %314 = dma.done %s307, 512
        $region44: #{elmo_forward.3} parent=35 // pred_fallthru
          _
        %s315 = sand.u32 %s27, 1
        %s316 = scalar_lea.sflag [#allocation9], %s315
        %s317 = sand.u32 %s109, 1
        %s318 = smul.addr %s317, 16
        %s319 = scalar_lea.vmem [#allocation10], %s318
        // Predicated region
        $region45: #{elmo_forward.3} parent=35 // pred_check
          %p320 = pneg %p122
        $region46: #{elmo_forward.3} parent=35 // pred_check_branch
          %322 = sbr.rel (%p320) target = $region48
        $region47: #{elmo_forward.3} parent=35 // pred_region
          %323 = dma.done %s316, 256
        $region48: #{elmo_forward.3} parent=35 // pred_fallthru
          _
        %s324 = sand.u32 %s135, 1
        %s325 = scalar_lea.sflag [#allocation12], %s324
        %s326 = sand.u32 %s135, 1
        %s327 = scalar_lea.vmem [#allocation11], %s326
        // Predicated region
        $region49: #{elmo_forward.3} parent=35 // pred_check
          %p328 = pneg %p148
        $region50: #{elmo_forward.3} parent=35 // pred_check_branch
          %330 = sbr.rel (%p328) target = $region52
        $region51: #{elmo_forward.3} parent=35 // pred_region
          %331 = dma.done %s325, 16
        $region52: #{elmo_forward.3} parent=35 // pred_fallthru
          _
        %s332 = sand.u32 %s57, 1
        %s333 = scalar_lea.sflag [#allocation6], %s332
        %s334 = sand.u32 %s57, 1
        %s335 = smul.addr %s334, 32
        %s336 = scalar_lea.vmem [#allocation5], %s335
        %p337 = pneg %p70
        %p338 = pneg %p67
        %s339 = sand.u32 %s27, 1
        %s340 = scalar_lea.sflag [#allocation9], %s339
        %s341 = sand.u32 %s83, 1
        %s342 = smul.addr %s341, 32
        %s343 = scalar_lea.vmem [#allocation8], %s342
        %p344 = pneg %p96
        %p345 = pneg %p93
        %s346 = sand.u32 %s27, 1
        %s347 = scalar_lea.sflag [#allocation9], %s346
        %s348 = sand.u32 %s109, 1
        %s349 = smul.addr %s348, 16
        %s350 = scalar_lea.vmem [#allocation10], %s349
        %p351 = pneg %p122
        %p352 = pneg %p119
        %s353 = sand.u32 %s135, 1
        %s354 = scalar_lea.sflag [#allocation12], %s353
        %s355 = sand.u32 %s135, 1
        %s356 = scalar_lea.vmem [#allocation11], %s355
        %p357 = pneg %p148
        %p358 = pneg %p145
        %p359 = pneg %p186
        %p360 = pneg %p183
        %s361 = sand.u32 %s173, 1
        %s362 = scalar_lea.sflag [#allocation7], %s361
        %s363 = sand.u32 %s173, 1
        %s364 = smul.addr %s363, 32
        %s365 = scalar_lea.vmem [#allocation13], %s364
        %s366 = ssub.s32 1, %s31
        %s367 = smul.u32 %s366, %s32
        %s368 = ssub.s32 1, %s32
        %s369 = smul.u32 %s31, %s368
        %s370 = sadd.s32 %s367, %s369
        %s371 = smul.u32 4, %s370
        %s372 = ssub.s32 1, %s31
        %s373 = smul.u32 %s372, %s32
        %s374 = ssub.s32 1, %s32
        %s375 = smul.u32 %s31, %s374
        %s376 = sadd.s32 %s373, %s375
        %s377 = smul.u32 4, %s376
        %p378 = scmp.eq.s32.totalorder %s32, 0
        // Predicated region
        $region53: #{elmo_forward.3} parent=35 // pred_check
          %p379 = pneg %p378
        $region54: #{elmo_forward.3} parent=35 // pred_check_branch
          %381 = sbr.rel (%p379) target = $region56
        $region55: #{elmo_forward.3} parent=35 // pred_region
          %vm382 = vcmask 130048
          %383 = vst.msk [vmem:[#allocation3] sm:$0xff] %vm382, 0.0
          %384 = vst.msk [vmem:[#allocation4] sm:$0xff] %vm382, 0.0
        $region56: #{elmo_forward.3} parent=35 // pred_fallthru
          _
        %v385 = vld [vmem:[%s301] sm:$0xff]
        %v386 = vld [vmem:[%s301 + $0x8] sm:$0xff]
        %v387 = vld [vmem:[%s301 + $0x10] sm:$0xff]
        %v388 = vld [vmem:[%s301 + $0x18] sm:$0xff]
        %v389 = vld [vmem:[%s310] sm:$0xff]
        %v390 = vld [vmem:[%s310 + $0x8] sm:$0xff]
        %v391 = vld [vmem:[%s310 + $0x10] sm:$0xff]
        %v392 = vld [vmem:[%s310 + $0x18] sm:$0xff]
        %v393 = vld [vmem:[%s327] sm:$0x1]
        %v395 = vlaneseq
        %v396 = vshrl.u32 %v395, 7
        %v397 = vsub.s32 0, %v396
        %v398 = vrot.slane %v393, %v397
        %vm400 = vcmask 261120
        %v402 = vsel %vm400, %v385, 0
        %v405 = vsel %vm400, %v386, 0
        %v408 = vsel %vm400, %v387, 0
        %v411 = vsel %vm400, %v388, 0
        %413 = vmatprep.subr.mxu0 0.0
        %414 = vmatpush1.msra.mxu0 %v389
        %415 = vmatprep.subr.mxu0 0.0
        %416 = vmatpush1.msra.mxu0 %v390
        %417 = vmatprep.subr.mxu0 0.0
        %418 = vmatpush1.msra.mxu0 %v391
        %419 = vmatprep.subr.mxu0 0.0
        %420 = vmatpush1.msra.mxu0 %v392
        %421 = vmatprep.subr.mxu0 0.0
        %422 = vmatpush1.msra.mxu0 0.0
        %423 = vmatprep.subr.mxu0 0.0
        %424 = vmatpush1.msra.mxu0 0.0
        %425 = vmatprep.subr.mxu0 0.0
        %426 = vmatpush1.msra.mxu0 0.0
        %427 = vmatprep.subr.mxu0 0.0
        %428 = vmatpush1.msra.mxu0 0.0
        %429 = vmatprep.subr.mxu0 0.0
        %430 = vmatpush1.msra.mxu0 0.0
        %431 = vmatprep.subr.mxu0 0.0
        %432 = vmatpush1.msra.mxu0 0.0
        %433 = vmatprep.subr.mxu0 0.0
        %434 = vmatpush1.msra.mxu0 0.0
        %435 = vmatprep.subr.mxu0 0.0
        %436 = vmatpush1.msra.mxu0 0.0
        %437 = vmatprep.subr.mxu0 0.0
        %438 = vmatpush1.msra.mxu0 0.0
        %439 = vmatprep.subr.mxu0 0.0
        %440 = vmatpush1.msra.mxu0 0.0
        %441 = vmatprep.subr.mxu0 0.0
        %442 = vmatpush1.msra.mxu0 0.0
        %443 = vmatprep.subr.mxu0 0.0
        %444 = vmatpush1.msra.mxu0 0.0
        %445 = vmatprep.subr.mxu0 0.0
        %446 = vmatpush1.msra.mxu0 0.0
        %447 = vmatprep.subr.mxu0 0.0
        %448 = vmatpush1.msra.mxu0 0.0
        %449 = vmatprep.subr.mxu0 0.0
        %450 = vmatpush1.msra.mxu0 0.0
        %451 = vmatprep.subr.mxu0 0.0
        %452 = vmatpush1.msra.mxu0 0.0
        %453 = vmatprep.subr.mxu0 0.0
        %454 = vmatpush1.msra.mxu0 0.0
        %455 = vmatprep.subr.mxu0 0.0
        %456 = vmatpush1.msra.mxu0 0.0
        %457 = vmatprep.subr.mxu0 0.0
        %458 = vmatpush1.msra.mxu0 0.0
        %459 = vmatprep.subr.mxu0 0.0
        %460 = vmatpush1.msra.mxu0 0.0
        %461 = vmatprep.subr.mxu0 0.0
        %462 = vmatpush1.msra.mxu0 0.0
        %463 = vmatprep.subr.mxu0 0.0
        %464 = vmatpush1.msra.mxu0 0.0
        %465 = vmatprep.subr.mxu0 0.0
        %466 = vmatpush1.msra.mxu0 0.0
        %467 = vmatprep.subr.mxu0 0.0
        %468 = vmatpush1.msra.mxu0 0.0
        %469 = vmatprep.subr.mxu0 0.0
        %470 = vmatpush1.msra.mxu0 0.0
        %471 = vmatprep.subr.mxu0 0.0
        %472 = vmatpush1.msra.mxu0 0.0
        %473 = vmatprep.subr.mxu0 0.0
        %474 = vmatpush1.msra.mxu0 0.0
        %475 = vmatprep.subr.mxu0 0.0
        %476 = vmatpush1.msra.mxu0 0.0
        %477 = vmatprep.mubr.f32.mxu0 0.0
        %478 = vmatmul.mubr.f32.gmra.mrb[0].mxu0 %v402
        %v479 = vpop.f32.mrb[0].mxu0
        %v480 = vadd.f32 %v398, %v479
        %v481 = vpop.f32.mrb[0].mxu0
        %482 = vmatprep.mubr.f32.mxu0 0.0
        %483 = vmatmul.mubr.f32.gmra.mrb[0].mxu0 %v405
        %v484 = vpop.f32.mrb[0].mxu0
        %v485 = vadd.f32 %v398, %v484
        %v486 = vpop.f32.mrb[0].mxu0
        %487 = vmatprep.mubr.f32.mxu0 0.0
        %488 = vmatmul.mubr.f32.gmra.mrb[0].mxu0 %v408
        %v489 = vpop.f32.mrb[0].mxu0
        %v490 = vadd.f32 %v398, %v489
        %v491 = vpop.f32.mrb[0].mxu0
        %492 = vmatprep.mubr.f32.mxu0 0.0
        %493 = vmatmul.mubr.f32.gmra.mrb[0].mxu0 %v411
        %v494 = vpop.f32.mrb[0].mxu0
        %v495 = vadd.f32 %v398, %v494
        %v496 = vpop.f32.mrb[0].mxu0
        %497 = vdwg.mxu0
        %vm498 = vcmask 523264
        %499 = vst.msk [vmem:[#allocation2] sm:$0xff] %vm498, %v480
        %500 = vst.msk [vmem:[#allocation2 + $0x8] sm:$0xff] %vm498, %v485
        %501 = vst.msk [vmem:[#allocation2 + $0x10] sm:$0xff] %vm498, %v490
        %502 = vst.msk [vmem:[#allocation2 + $0x18] sm:$0xff] %vm498, %v495
        %v503 = vld [vmem:[%s319] sm:$0xff]
        %v504 = vld [vmem:[%s319 + $0x8] sm:$0xff]
        %v505 = vld [vmem:[#allocation3] sm:$0xff]
        %v506 = vld [vmem:[#allocation4] sm:$0xff]
        %s507 = smul.u32 %s31, 3
        %s508 = smul.u32 %s507, 8
        %s509 = scalar_lea.vmem [#allocation2], %s508
        %v510 = vld [vmem:[%s509] sm:$0xff]
        %vm511 = vcmask 130048
        %v513 = vsel %vm511, %v505, 0
        %515 = vmatprep.subr.mxu0 0.0
        %516 = vmatpush1.msra.mxu0 %v503
        %517 = vmatprep.subr.mxu0 0.0
        %518 = vmatpush1.msra.mxu0 %v504
        %519 = vmatprep.subr.mxu0 0.0
        %520 = vmatpush1.msra.mxu0 0.0
        %521 = vmatprep.subr.mxu0 0.0
        %522 = vmatpush1.msra.mxu0 0.0
        %523 = vmatprep.subr.mxu0 0.0
        %524 = vmatpush1.msra.mxu0 0.0
        %525 = vmatprep.subr.mxu0 0.0
        %526 = vmatpush1.msra.mxu0 0.0
        %527 = vmatprep.subr.mxu0 0.0
        %528 = vmatpush1.msra.mxu0 0.0
        %529 = vmatprep.subr.mxu0 0.0
        %530 = vmatpush1.msra.mxu0 0.0
        %531 = vmatprep.subr.mxu0 0.0
        %532 = vmatpush1.msra.mxu0 0.0
        %533 = vmatprep.subr.mxu0 0.0
        %534 = vmatpush1.msra.mxu0 0.0
        %535 = vmatprep.subr.mxu0 0.0
        %536 = vmatpush1.msra.mxu0 0.0
        %537 = vmatprep.subr.mxu0 0.0
        %538 = vmatpush1.msra.mxu0 0.0
        %539 = vmatprep.subr.mxu0 0.0
        %540 = vmatpush1.msra.mxu0 0.0
        %541 = vmatprep.subr.mxu0 0.0
        %542 = vmatpush1.msra.mxu0 0.0
        %543 = vmatprep.subr.mxu0 0.0
        %544 = vmatpush1.msra.mxu0 0.0
        %545 = vmatprep.subr.mxu0 0.0
        %546 = vmatpush1.msra.mxu0 0.0
        %547 = vmatprep.subr.mxu0 0.0
        %548 = vmatpush1.msra.mxu0 0.0
        %549 = vmatprep.subr.mxu0 0.0
        %550 = vmatpush1.msra.mxu0 0.0
        %551 = vmatprep.subr.mxu0 0.0
        %552 = vmatpush1.msra.mxu0 0.0
        %553 = vmatprep.subr.mxu0 0.0
        %554 = vmatpush1.msra.mxu0 0.0
        %555 = vmatprep.subr.mxu0 0.0
        %556 = vmatpush1.msra.mxu0 0.0
        %557 = vmatprep.subr.mxu0 0.0
        %558 = vmatpush1.msra.mxu0 0.0
        %559 = vmatprep.subr.mxu0 0.0
        %560 = vmatpush1.msra.mxu0 0.0
        %561 = vmatprep.subr.mxu0 0.0
        %562 = vmatpush1.msra.mxu0 0.0
        %563 = vmatprep.subr.mxu0 0.0
        %564 = vmatpush1.msra.mxu0 0.0
        %565 = vmatprep.subr.mxu0 0.0
        %566 = vmatpush1.msra.mxu0 0.0
        %567 = vmatprep.subr.mxu0 0.0
        %568 = vmatpush1.msra.mxu0 0.0
        %569 = vmatprep.subr.mxu0 0.0
        %570 = vmatpush1.msra.mxu0 0.0
        %571 = vmatprep.subr.mxu0 0.0
        %572 = vmatpush1.msra.mxu0 0.0
        %573 = vmatprep.subr.mxu0 0.0
        %574 = vmatpush1.msra.mxu0 0.0
        %575 = vmatprep.subr.mxu0 0.0
        %576 = vmatpush1.msra.mxu0 0.0
        %577 = vmatprep.subr.mxu0 0.0
        %578 = vmatpush1.msra.mxu0 0.0
        %579 = vmatprep.mubr.f32.mxu0 0.0
        %580 = vmatmul.mubr.f32.gmra.mrb[0].mxu0 %v513
        %v581 = vpop.f32.mrb[0].mxu0
        %v582 = vadd.f32 0.0, %v581
        %v583 = vpop.f32.mrb[0].mxu0
        %584 = vdwg.mxu0
        %v585 = vadd.f32 %v510, %v582
        %v586 = vxor.u32 %v585, 2147483648
        %v587 = vmul.f32 %v586, 1.442695
        %v588 = vpow.pop %v587
        %v589 = vadd.f32 %v588, 1.0
        %v590 = vrcp.pop %v589
        %v591 = vmul.f32 1.0, %v590
        %v592 = vtanh.pop %v585
        %594 = vrot.lane.b32.xlu0 %v506, 16
        %v595 = vpop.permute.xlu0 %594
        %v597 = vmul.f32 %v591, %v595
        %599 = vrot.lane.b32.xlu0 %v592, 96
        %v600 = vpop.permute.xlu0 %599
        %v602 = vmul.f32 %v591, %v600
        %604 = vrot.lane.b32.xlu0 %v602, 16
        %v605 = vpop.permute.xlu0 %604
        %v607 = vadd.f32 %v597, %v605
        %v608 = vtanh.pop %v607
        %610 = vrot.lane.b32.xlu0 %v608, 32
        %v611 = vpop.permute.xlu0 %610
        %v613 = vmul.f32 %v591, %v611
        %615 = vrot.lane.b32.xlu0 %v613, 80
        %v616 = vpop.permute.xlu0 %615
        %s618 = scalar_lea.vmem %s365, %s508 [#allocation13]
        %619 = vst.msk [vmem:[%s618] sm:$0xff] %vm511, %v616
        %s620 = ssub.s32 1, %s31
        %s621 = smul.u32 %s31, 2
        %s622 = sadd.s32 %s620, %s621
        %s623 = smul.u32 %s622, 8
        %s624 = scalar_lea.vmem [#allocation2], %s623
        %v625 = vld [vmem:[%s624] sm:$0xff]
        %v626 = vsel %vm511, %v616, 0
        %628 = vmatprep.subr.mxu0 0.0
        %629 = vmatpush1.msra.mxu0 %v503
        %630 = vmatprep.subr.mxu0 0.0
        %631 = vmatpush1.msra.mxu0 %v504
        %632 = vmatprep.subr.mxu0 0.0
        %633 = vmatpush1.msra.mxu0 0.0
        %634 = vmatprep.subr.mxu0 0.0
        %635 = vmatpush1.msra.mxu0 0.0
        %636 = vmatprep.subr.mxu0 0.0
        %637 = vmatpush1.msra.mxu0 0.0
        %638 = vmatprep.subr.mxu0 0.0
        %639 = vmatpush1.msra.mxu0 0.0
        %640 = vmatprep.subr.mxu0 0.0
        %641 = vmatpush1.msra.mxu0 0.0
        %642 = vmatprep.subr.mxu0 0.0
        %643 = vmatpush1.msra.mxu0 0.0
        %644 = vmatprep.subr.mxu0 0.0
        %645 = vmatpush1.msra.mxu0 0.0
        %646 = vmatprep.subr.mxu0 0.0
        %647 = vmatpush1.msra.mxu0 0.0
        %648 = vmatprep.subr.mxu0 0.0
        %649 = vmatpush1.msra.mxu0 0.0
        %650 = vmatprep.subr.mxu0 0.0
        %651 = vmatpush1.msra.mxu0 0.0
        %652 = vmatprep.subr.mxu0 0.0
        %653 = vmatpush1.msra.mxu0 0.0
        %654 = vmatprep.subr.mxu0 0.0
        %655 = vmatpush1.msra.mxu0 0.0
        %656 = vmatprep.subr.mxu0 0.0
        %657 = vmatpush1.msra.mxu0 0.0
        %658 = vmatprep.subr.mxu0 0.0
        %659 = vmatpush1.msra.mxu0 0.0
        %660 = vmatprep.subr.mxu0 0.0
        %661 = vmatpush1.msra.mxu0 0.0
        %662 = vmatprep.subr.mxu0 0.0
        %663 = vmatpush1.msra.mxu0 0.0
        %664 = vmatprep.subr.mxu0 0.0
        %665 = vmatpush1.msra.mxu0 0.0
        %666 = vmatprep.subr.mxu0 0.0
        %667 = vmatpush1.msra.mxu0 0.0
        %668 = vmatprep.subr.mxu0 0.0
        %669 = vmatpush1.msra.mxu0 0.0
        %670 = vmatprep.subr.mxu0 0.0
        %671 = vmatpush1.msra.mxu0 0.0
        %672 = vmatprep.subr.mxu0 0.0
        %673 = vmatpush1.msra.mxu0 0.0
        %674 = vmatprep.subr.mxu0 0.0
        %675 = vmatpush1.msra.mxu0 0.0
        %676 = vmatprep.subr.mxu0 0.0
        %677 = vmatpush1.msra.mxu0 0.0
        %678 = vmatprep.subr.mxu0 0.0
        %679 = vmatpush1.msra.mxu0 0.0
        %680 = vmatprep.subr.mxu0 0.0
        %681 = vmatpush1.msra.mxu0 0.0
        %682 = vmatprep.subr.mxu0 0.0
        %683 = vmatpush1.msra.mxu0 0.0
        %684 = vmatprep.subr.mxu0 0.0
        %685 = vmatpush1.msra.mxu0 0.0
        %686 = vmatprep.subr.mxu0 0.0
        %687 = vmatpush1.msra.mxu0 0.0
        %688 = vmatprep.subr.mxu0 0.0
        %689 = vmatpush1.msra.mxu0 0.0
        %690 = vmatprep.subr.mxu0 0.0
        %691 = vmatpush1.msra.mxu0 0.0
        %692 = vmatprep.mubr.f32.mxu0 0.0
        %693 = vmatmul.mubr.f32.gmra.mrb[0].mxu0 %v626
        %v694 = vpop.f32.mrb[0].mxu0
        %v695 = vadd.f32 0.0, %v694
        %v696 = vpop.f32.mrb[0].mxu0
        %697 = vdwg.mxu0
        %v698 = vadd.f32 %v625, %v695
        %v699 = vxor.u32 %v698, 2147483648
        %v700 = vmul.f32 %v699, 1.442695
        %v701 = vpow.pop %v700
        %v702 = vadd.f32 %v701, 1.0
        %v703 = vrcp.pop %v702
        %v704 = vmul.f32 1.0, %v703
        %v705 = vtanh.pop %v698
        %v706 = vmul.f32 %v704, %v607
        %708 = vrot.lane.b32.xlu0 %v705, 96
        %v709 = vpop.permute.xlu0 %708
        %v711 = vmul.f32 %v704, %v709
        %713 = vrot.lane.b32.xlu0 %v711, 16
        %v714 = vpop.permute.xlu0 %713
        %v716 = vadd.f32 %v706, %v714
        %v717 = vtanh.pop %v716
        %719 = vrot.lane.b32.xlu0 %v717, 32
        %v720 = vpop.permute.xlu0 %719
        %v722 = vmul.f32 %v704, %v720
        %724 = vrot.lane.b32.xlu0 %v722, 80
        %v725 = vpop.permute.xlu0 %724
        %s727 = scalar_lea.vmem %s365, %s623 [#allocation13]
        %728 = vst.msk [vmem:[%s727] sm:$0xff] %vm511, %v725
        %s729 = smul.u32 %s620, 2
        %s730 = sadd.s32 %s729, %s31
        %s731 = smul.u32 %s730, 8
        %s732 = scalar_lea.vmem [#allocation2], %s731
        %v733 = vld [vmem:[%s732] sm:$0xff]
        %v734 = vsel %vm511, %v725, 0
        %736 = vmatprep.subr.mxu0 0.0
        %737 = vmatpush1.msra.mxu0 %v503
        %738 = vmatprep.subr.mxu0 0.0
        %739 = vmatpush1.msra.mxu0 %v504
        %740 = vmatprep.subr.mxu0 0.0
        %741 = vmatpush1.msra.mxu0 0.0
        %742 = vmatprep.subr.mxu0 0.0
        %743 = vmatpush1.msra.mxu0 0.0
        %744 = vmatprep.subr.mxu0 0.0
        %745 = vmatpush1.msra.mxu0 0.0
        %746 = vmatprep.subr.mxu0 0.0
        %747 = vmatpush1.msra.mxu0 0.0
        %748 = vmatprep.subr.mxu0 0.0
        %749 = vmatpush1.msra.mxu0 0.0
        %750 = vmatprep.subr.mxu0 0.0
        %751 = vmatpush1.msra.mxu0 0.0
        %752 = vmatprep.subr.mxu0 0.0
        %753 = vmatpush1.msra.mxu0 0.0
        %754 = vmatprep.subr.mxu0 0.0
        %755 = vmatpush1.msra.mxu0 0.0
        %756 = vmatprep.subr.mxu0 0.0
        %757 = vmatpush1.msra.mxu0 0.0
        %758 = vmatprep.subr.mxu0 0.0
        %759 = vmatpush1.msra.mxu0 0.0
        %760 = vmatprep.subr.mxu0 0.0
        %761 = vmatpush1.msra.mxu0 0.0
        %762 = vmatprep.subr.mxu0 0.0
        %763 = vmatpush1.msra.mxu0 0.0
        %764 = vmatprep.subr.mxu0 0.0
        %765 = vmatpush1.msra.mxu0 0.0
        %766 = vmatprep.subr.mxu0 0.0
        %767 = vmatpush1.msra.mxu0 0.0
        %768 = vmatprep.subr.mxu0 0.0
        %769 = vmatpush1.msra.mxu0 0.0
        %770 = vmatprep.subr.mxu0 0.0
        %771 = vmatpush1.msra.mxu0 0.0
        %772 = vmatprep.subr.mxu0 0.0
        %773 = vmatpush1.msra.mxu0 0.0
        %774 = vmatprep.subr.mxu0 0.0
        %775 = vmatpush1.msra.mxu0 0.0
        %776 = vmatprep.subr.mxu0 0.0
        %777 = vmatpush1.msra.mxu0 0.0
        %778 = vmatprep.subr.mxu0 0.0
        %779 = vmatpush1.msra.mxu0 0.0
        %780 = vmatprep.subr.mxu0 0.0
        %781 = vmatpush1.msra.mxu0 0.0
        %782 = vmatprep.subr.mxu0 0.0
        %783 = vmatpush1.msra.mxu0 0.0
        %784 = vmatprep.subr.mxu0 0.0
        %785 = vmatpush1.msra.mxu0 0.0
        %786 = vmatprep.subr.mxu0 0.0
        %787 = vmatpush1.msra.mxu0 0.0
        %788 = vmatprep.subr.mxu0 0.0
        %789 = vmatpush1.msra.mxu0 0.0
        %790 = vmatprep.subr.mxu0 0.0
        %791 = vmatpush1.msra.mxu0 0.0
        %792 = vmatprep.subr.mxu0 0.0
        %793 = vmatpush1.msra.mxu0 0.0
        %794 = vmatprep.subr.mxu0 0.0
        %795 = vmatpush1.msra.mxu0 0.0
        %796 = vmatprep.subr.mxu0 0.0
        %797 = vmatpush1.msra.mxu0 0.0
        %798 = vmatprep.subr.mxu0 0.0
        %799 = vmatpush1.msra.mxu0 0.0
        %800 = vmatprep.mubr.f32.mxu0 0.0
        %801 = vmatmul.mubr.f32.gmra.mrb[0].mxu0 %v734
        %v802 = vpop.f32.mrb[0].mxu0
        %v803 = vadd.f32 0.0, %v802
        %v804 = vpop.f32.mrb[0].mxu0
        %805 = vdwg.mxu0
        %v806 = vadd.f32 %v733, %v803
        %v807 = vxor.u32 %v806, 2147483648
        %v808 = vmul.f32 %v807, 1.442695
        %v809 = vpow.pop %v808
        %v810 = vadd.f32 %v809, 1.0
        %v811 = vrcp.pop %v810
        %v812 = vmul.f32 1.0, %v811
        %v813 = vtanh.pop %v806
        %v814 = vmul.f32 %v812, %v716
        %816 = vrot.lane.b32.xlu0 %v813, 96
        %v817 = vpop.permute.xlu0 %816
        %v819 = vmul.f32 %v812, %v817
        %821 = vrot.lane.b32.xlu0 %v819, 16
        %v822 = vpop.permute.xlu0 %821
        %v824 = vadd.f32 %v814, %v822
        %v825 = vtanh.pop %v824
        %827 = vrot.lane.b32.xlu0 %v825, 32
        %v828 = vpop.permute.xlu0 %827
        %v830 = vmul.f32 %v812, %v828
        %832 = vrot.lane.b32.xlu0 %v830, 80
        %v833 = vpop.permute.xlu0 %832
        %s835 = scalar_lea.vmem %s365, %s731 [#allocation13]
        %836 = vst.msk [vmem:[%s835] sm:$0xff] %vm511, %v833
        %s837 = smul.u32 %s620, 3
        %s838 = smul.u32 %s837, 8
        %s839 = scalar_lea.vmem [#allocation2], %s838
        %v840 = vld [vmem:[%s839] sm:$0xff]
        %v841 = vsel %vm511, %v833, 0
        %843 = vmatprep.subr.mxu0 0.0
        %844 = vmatpush1.msra.mxu0 %v503
        %845 = vmatprep.subr.mxu0 0.0
        %846 = vmatpush1.msra.mxu0 %v504
        %847 = vmatprep.subr.mxu0 0.0
        %848 = vmatpush1.msra.mxu0 0.0
        %849 = vmatprep.subr.mxu0 0.0
        %850 = vmatpush1.msra.mxu0 0.0
        %851 = vmatprep.subr.mxu0 0.0
        %852 = vmatpush1.msra.mxu0 0.0
        %853 = vmatprep.subr.mxu0 0.0
        %854 = vmatpush1.msra.mxu0 0.0
        %855 = vmatprep.subr.mxu0 0.0
        %856 = vmatpush1.msra.mxu0 0.0
        %857 = vmatprep.subr.mxu0 0.0
        %858 = vmatpush1.msra.mxu0 0.0
        %859 = vmatprep.subr.mxu0 0.0
        %860 = vmatpush1.msra.mxu0 0.0
        %861 = vmatprep.subr.mxu0 0.0
        %862 = vmatpush1.msra.mxu0 0.0
        %863 = vmatprep.subr.mxu0 0.0
        %864 = vmatpush1.msra.mxu0 0.0
        %865 = vmatprep.subr.mxu0 0.0
        %866 = vmatpush1.msra.mxu0 0.0
        %867 = vmatprep.subr.mxu0 0.0
        %868 = vmatpush1.msra.mxu0 0.0
        %869 = vmatprep.subr.mxu0 0.0
        %870 = vmatpush1.msra.mxu0 0.0
        %871 = vmatprep.subr.mxu0 0.0
        %872 = vmatpush1.msra.mxu0 0.0
        %873 = vmatprep.subr.mxu0 0.0
        %874 = vmatpush1.msra.mxu0 0.0
        %875 = vmatprep.subr.mxu0 0.0
        %876 = vmatpush1.msra.mxu0 0.0
        %877 = vmatprep.subr.mxu0 0.0
        %878 = vmatpush1.msra.mxu0 0.0
        %879 = vmatprep.subr.mxu0 0.0
        %880 = vmatpush1.msra.mxu0 0.0
        %881 = vmatprep.subr.mxu0 0.0
        %882 = vmatpush1.msra.mxu0 0.0
        %883 = vmatprep.subr.mxu0 0.0
        %884 = vmatpush1.msra.mxu0 0.0
        %885 = vmatprep.subr.mxu0 0.0
        %886 = vmatpush1.msra.mxu0 0.0
        %887 = vmatprep.subr.mxu0 0.0
        %888 = vmatpush1.msra.mxu0 0.0
        %889 = vmatprep.subr.mxu0 0.0
        %890 = vmatpush1.msra.mxu0 0.0
        %891 = vmatprep.subr.mxu0 0.0
        %892 = vmatpush1.msra.mxu0 0.0
        %893 = vmatprep.subr.mxu0 0.0
        %894 = vmatpush1.msra.mxu0 0.0
        %895 = vmatprep.subr.mxu0 0.0
        %896 = vmatpush1.msra.mxu0 0.0
        %897 = vmatprep.subr.mxu0 0.0
        %898 = vmatpush1.msra.mxu0 0.0
        %899 = vmatprep.subr.mxu0 0.0
        %900 = vmatpush1.msra.mxu0 0.0
        %901 = vmatprep.subr.mxu0 0.0
        %902 = vmatpush1.msra.mxu0 0.0
        %903 = vmatprep.subr.mxu0 0.0
        %904 = vmatpush1.msra.mxu0 0.0
        %905 = vmatprep.subr.mxu0 0.0
        %906 = vmatpush1.msra.mxu0 0.0
        %907 = vmatprep.mubr.f32.mxu0 0.0
        %908 = vmatmul.mubr.f32.gmra.mrb[0].mxu0 %v841
        %v909 = vpop.f32.mrb[0].mxu0
        %v910 = vadd.f32 0.0, %v909
        %v911 = vpop.f32.mrb[0].mxu0
        %912 = vdwg.mxu0
        %v913 = vadd.f32 %v840, %v910
        %v914 = vxor.u32 %v913, 2147483648
        %v915 = vmul.f32 %v914, 1.442695
        %v916 = vpow.pop %v915
        %v917 = vadd.f32 %v916, 1.0
        %v918 = vrcp.pop %v917
        %v919 = vmul.f32 1.0, %v918
        %v920 = vtanh.pop %v913
        %v921 = vmul.f32 %v919, %v824
        %923 = vrot.lane.b32.xlu0 %v920, 96
        %v924 = vpop.permute.xlu0 %923
        %v926 = vmul.f32 %v919, %v924
        %928 = vrot.lane.b32.xlu0 %v926, 16
        %v929 = vpop.permute.xlu0 %928
        %v931 = vadd.f32 %v921, %v929
        %v932 = vtanh.pop %v931
        %934 = vrot.lane.b32.xlu0 %v932, 32
        %v935 = vpop.permute.xlu0 %934
        %v937 = vmul.f32 %v919, %v935
        %939 = vrot.lane.b32.xlu0 %v937, 80
        %v940 = vpop.permute.xlu0 %939
        %s942 = scalar_lea.vmem %s365, %s838 [#allocation13]
        %943 = vst.msk [vmem:[%s942] sm:$0xff] %vm511, %v940
        %944 = vst.msk [vmem:[#allocation3] sm:$0xff] %vm511, %v940
        %946 = vrot.lane.b32.xlu0 %v931, 112
        %v947 = vpop.permute.xlu0 %946
        %949 = vst.msk [vmem:[#allocation4] sm:$0xff] %vm511, %v947
        %s950 = sand.u32 %s173, 1
        %s951 = scalar_lea.sflag [#allocation7], %s950
        %s952 = sand.u32 %s173, 1
        %s953 = smul.addr %s952, 32
        %s954 = scalar_lea.vmem [#allocation13], %s953
        // Predicated region
        $region57: #{elmo_forward.3} parent=35 // pred_check
          %p955 = pneg %p183
        $region58: #{elmo_forward.3} parent=35 // pred_check_branch
          %957 = sbr.rel (%p955) target = $region60
        $region59: #{elmo_forward.3} parent=35 // pred_region
          %s958 = ssub.s32 1, %s31
          %s959 = smul.u32 %s958, %s32
          %s960 = ssub.s32 1, %s32
          %s961 = smul.u32 %s31, %s960
          %s962 = sadd.s32 %s959, %s961
          %s963 = smul.u32 4, %s962
          %s965 = ssub.s32 512, 512
          %966 = vsyncadd %s951, %s965
          %s967 = smul.addr %s31, 8
          %s968 = sadd.s32 %s963, %s967
          %s969 = smul.addr %s968, 128
          %s970 = scalar_lea.hbm %s4, %s969
          %s971 = sshll.u32 %s954, 4
          %s972 = int_to_ptr.vmem [resolvable:$true] %s971
          %977 = dma.vmem_to_hbm [thread:$0]  %s972, 512, %s970, %s951, 128, 128, 8
        $region60: #{elmo_forward.3} parent=35 // pred_fallthru
          _
      $region36: #{elmo_forward.3} parent=5 // pred_fallthru
        _
      %p978 = scmp.le.s32.totalorder 2, %s22
      // Predicated region
      $region61: #{elmo_forward.3} parent=5 // pred_check
        %p979 = pneg %p978
      $region62: #{elmo_forward.3} parent=5 // pred_check_branch
        %981 = sbr.rel (%p979) target = $region64
      $region63: #{elmo_forward.3} parent=5 // pred_region
        %s982 = ssub.s32 %s22, 2
        // Predicated region
        $region65: #{elmo_forward.3} parent=63 // pred_check
          %p983 = pneg %p189
        $region66: #{elmo_forward.3} parent=63 // pred_check_branch
          %985 = sbr.rel (%p983) target = $region68
        $region67: #{elmo_forward.3} parent=63 // pred_region
          %s986 = sand.u32 %s174, 1
          %s987 = scalar_lea.sflag [#allocation7], %s986
          %s988 = sand.u32 %s174, 1
          %s989 = smul.addr %s988, 32
          %s990 = scalar_lea.vmem [#allocation13], %s989
          %991 = dma.done %s987, 512
        $region68: #{elmo_forward.3} parent=63 // pred_fallthru
          _
      $region64: #{elmo_forward.3} parent=5 // pred_fallthru
        _
    $region6: #{elmo_forward.3} parent=1 // loop_footer
      %s26 = sadd.s32 1, %s22
    $region7: #{elmo_forward.3} parent=1 // loop_footer_branch
      %21 = sbr.rel target = $region3
    $region8: #{elmo_forward.3} parent=1 // loop_exit
      _
    %992 = vsyncpa [#allocation6], 1
    %s993 = scalar_lea.sflag [#allocation6], 1
    %994 = vsyncpa %s993, 1
    %995 = vsyncpa [#allocation9], 1
    %s996 = scalar_lea.sflag [#allocation9], 1
    %997 = vsyncpa %s996, 1
    %998 = vsyncpa [#allocation12], 1
    %s999 = scalar_lea.sflag [#allocation12], 1
    %1000 = vsyncpa %s999, 1
    %1001 = vsyncpa [#allocation7], 1
    %s1002 = scalar_lea.sflag [#allocation7], 1
    %1003 = vsyncpa %s1002, 1

</llo_original>
